<compile_context>
chip_gen: v6e
topology: v6e:2x2x1
jax: 0.10.0
libtpu: 0.0.40
codegen_flags: <defaults>
</compile_context>

<pallas_src>
import functools
import math

import jax
import jax.numpy as jnp
from jax import lax
from jax.experimental import pallas as pl
from jax.experimental.pallas import tpu as pltpu


def _up_conv_kernel(x_ref, w_ref, b_ref, ucol_ref, o_ref, xu_ref, col_ref,
                    *, tho, cp, cout, w_in):
    """Fused nearest-2x upsample + 3x3 conv for one (batch, output-row-tile).

    x_ref:    (1, H+2, Cp, W)     raw input, rows zero-padded by 1, channels padded to Cp
    w_ref:    (Cout, 9*Cp)        conv weight, tap-major ((dy*3+dx)*Cp + ci)
    b_ref:    (Cout, 1)           bias
    ucol_ref: (W, 2W+2)           constant 0/1 nearest-upsample (+ width pad) matrix
    o_ref:    (1, Cout, tho*2W)   flattened-NCHW output rows of this tile
    xu_ref:   (tho+2, Cp, 2W+2)   scratch: upsampled+padded rows needed by this tile
    col_ref:  (tho, 9*Cp, 2W)     scratch: tap-major im2col built in VMEM
    """
    wo = 2 * w_in
    hin = tho // 2 + 2
    t = pl.program_id(1)
    i0 = pl.multiple_of(t * (tho // 2), tho // 2)

    # Rows of the row-padded input feeding this output row tile (1-row halo included).
    xin = x_ref[0, pl.ds(i0, hin), :, :]                       # (hin, Cp, W)

    # Nearest-2x column upsample + width zero-pad as a constant matmul on the MXU.
    ucol = jnp.broadcast_to(ucol_ref[...], (hin, w_in, wo + 2))
    xcu = jnp.einsum('rck,rku->rcu', xin, ucol,
                     preferred_element_type=jnp.float32)       # (hin, Cp, 2W+2)

    # Nearest-2x row upsample: upsampled(+padded) row r0+k is input row (k+1)//2
    # of this tile's slice (r0 = 2*i0).
    for k in range(tho + 2):
        xu_ref[k] = xcu[(k + 1) // 2]

    # Tap-major im2col, entirely in VMEM:
    #   col[q, (dy*3+dx)*Cp + ci, c] = xu[q+dy, ci, c+dx]
    for dy in range(3):
        for dx in range(3):
            tap = dy * 3 + dx
            col_ref[:, tap * cp:(tap + 1) * cp, :] = xu_ref[dy:dy + tho, :, dx:dx + wo]

    # Single fused conv matmul, batched over the tho output rows, K = 9*Cp.
    wmat = jnp.broadcast_to(w_ref[...], (tho, cout, 9 * cp))
    res = jnp.einsum('qok,qkc->qoc', wmat, col_ref[...],
                     preferred_element_type=jnp.float32)       # (tho, Cout, 2W)
    res = res + b_ref[...]                                     # bias (Cout,1) broadcasts

    # Lane-dense store: one (Cout, tho*2W) write.
    out = jnp.concatenate([res[q] for q in range(tho)], axis=-1)
    o_ref[0] = out.astype(o_ref.dtype)


def _pick_row_tile(ho, wo):
    """Smallest even divisor of Ho whose flattened width is lane-dense (>=256, %128==0)."""
    for cand in range(2, ho + 1, 2):
        if ho % cand == 0 and (cand * wo) % 128 == 0 and cand * wo >= 256:
            return cand
    return ho  # full height (always a legal block)


def upsample_forward(x_nchw, weight_oihw, bias):
    """PyTorch `Upsample`: F.interpolate(x, 2, 'nearest') -> Conv2d(C, C, 3, padding=1)."""
    N, C, H, W = x_nchw.shape
    Ho, Wo = 2 * H, 2 * W
    Cout = weight_oihw.shape[0]
    Cp = max(8, -(-C // 8) * 8)          # pad channels to a multiple of 8 (sublane aligned)
    tho = _pick_row_tile(Ho, Wo)         # output rows per grid step
    T = Ho // tho

    # ---- tiny wrapper-side prep (input-sized, fused by XLA) ----
    # rows zero-padded by 1 (conv padding in upsampled space maps exactly onto this),
    # channels zero-padded to Cp, layout (N, H+2, Cp, W): rows lead, W sits in lanes.
    xprep = jnp.pad(x_nchw, ((0, 0), (0, Cp - C), (1, 1), (0, 0)))
    xprep = jnp.transpose(xprep, (0, 2, 1, 3))                  # (N, H+2, Cp, W)

    # weight (Cout, Cin, 3, 3) -> tap-major (Cout, 9*Cp)
    wt = jnp.transpose(weight_oihw, (0, 2, 3, 1))               # (Cout, 3, 3, Cin)
    wt = jnp.pad(wt, ((0, 0), (0, 0), (0, 0), (0, Cp - C)))
    wmat = wt.reshape(Cout, 9 * Cp)
    bias2d = bias.reshape(Cout, 1)

    # constant nearest-upsample (+ width pad) matrix: ucol[j, u] = 1 iff j == (u-1)//2
    src = (jnp.arange(Wo + 2) - 1) // 2
    ucol = (jnp.arange(W)[:, None] == src[None, :]).astype(jnp.float32)

    itemsize = jnp.dtype(x_nchw.dtype).itemsize
    cost = pl.CostEstimate(
        flops=2 * N * Ho * Wo * 9 * Cp * Cout,
        transcendentals=0,
        bytes_accessed=int(xprep.size * itemsize + N * Cout * Ho * Wo * itemsize),
    )

    kernel = functools.partial(_up_conv_kernel, tho=tho, cp=Cp, cout=Cout, w_in=W)
    out_flat = pl.pallas_call(
        kernel,
        out_shape=jax.ShapeDtypeStruct((N, Cout, Ho * Wo), x_nchw.dtype),
        grid_spec=pltpu.PrefetchScalarGridSpec(
            num_scalar_prefetch=0,
            grid=(N, T),
            in_specs=[
                # full per-batch input stays resident across the row-tile axis
                pl.BlockSpec((1, H + 2, Cp, W), lambda n, t: (n, 0, 0, 0)),
                pl.BlockSpec((Cout, 9 * Cp), lambda n, t: (0, 0)),
                pl.BlockSpec((Cout, 1), lambda n, t: (0, 0)),
                pl.BlockSpec((W, Wo + 2), lambda n, t: (0, 0)),
            ],
            out_specs=pl.BlockSpec((1, Cout, tho * Wo), lambda n, t: (n, 0, t)),
            scratch_shapes=[
                pltpu.VMEM((tho + 2, Cp, Wo + 2), jnp.float32),
                pltpu.VMEM((tho, 9 * Cp, Wo), jnp.float32),
            ],
        ),
        compiler_params=pltpu.CompilerParams(
            dimension_semantics=("parallel", "parallel"),
            vmem_limit_bytes=32 * 1024 * 1024,
        ),
        cost_estimate=cost,
    )(xprep, wmat, bias2d, ucol)

    # free metadata reshape back to NCHW
    return out_flat.reshape(N, Cout, Ho, Wo)


def _reference_forward(x_nchw, weight_oihw, bias):
    """Pure-JAX reference: F.interpolate(nearest, 2x) + Conv2d(3x3, pad=1)."""
    x_up = jnp.repeat(jnp.repeat(x_nchw, 2, axis=2), 2, axis=3)
    y = lax.conv_general_dilated(
        x_up, weight_oihw, window_strides=(1, 1),
        padding=((1, 1), (1, 1)),
        dimension_numbers=("NCHW", "OIHW", "NCHW"),
        precision=lax.Precision.HIGHEST)
    return y + bias.reshape(1, -1, 1, 1)


if __name__ == "__main__":
    N, C, H, W = 2, 4, 16, 16

    key = jax.random.PRNGKey(0)
    kx, kw, kb = jax.random.split(key, 3)

    x = jax.random.normal(kx, (N, C, H, W), jnp.float32)

    # Deterministic Conv2d-style init (uniform in +/- 1/sqrt(fan_in)).
    fan_in = C * 3 * 3
    bound = 1.0 / math.sqrt(fan_in)
    weight = jax.random.uniform(kw, (C, C, 3, 3), jnp.float32, -bound, bound)
    bias = jax.random.uniform(kb, (C,), jnp.float32, -bound, bound)

    out = jax.block_until_ready(upsample_forward(x, weight, bias))
    ref = jax.block_until_ready(_reference_forward(x, weight, bias))

    assert out.shape == (N, C, 2 * H, 2 * W), out.shape
    assert jnp.allclose(out, ref, atol=1e-4, rtol=1e-4), \
        f"mismatch vs reference: max |d| = {jnp.max(jnp.abs(out - ref))}"

    print("KERNEL_OK")
</pallas_src>

<mosaic_0001>
module attributes {stable_mosaic.version = 11 : i64} {
  func.func @_up_conv_kernel(%arg0: i32, %arg1: i32, %arg2: memref<1x18x8x16xf32, #tpu.memory_space<vmem>>, %arg3: memref<4x72xf32, #tpu.memory_space<vmem>>, %arg4: memref<4x1xf32, #tpu.memory_space<vmem>>, %arg5: memref<16x34xf32, #tpu.memory_space<vmem>>, %arg6: memref<1x4x256xf32, #tpu.memory_space<vmem>>, %arg7: memref<10x8x34xf32, #tpu.memory_space<vmem>>, %arg8: memref<8x72x32xf32, #tpu.memory_space<vmem>>) attributes {dimension_semantics = [#tpu.dimension_semantics<parallel>, #tpu.dimension_semantics<parallel>], iteration_bounds = array<i64: 2, 4>, scalar_prefetch = 0 : i64, scratch_operands = 2 : i64, tpu.core_type = #tpu.core_type<tc>, window_params = [{transform_indices = @transform_0, window_bounds = array<i64: 1, 18, 8, 16>}, {pipeline_mode = #tpu.pipeline_mode<synchronous>, transform_indices = @transform_1, window_bounds = array<i64: 4, 72>}, {pipeline_mode = #tpu.pipeline_mode<synchronous>, transform_indices = @transform_2, window_bounds = array<i64: 4, 1>}, {pipeline_mode = #tpu.pipeline_mode<synchronous>, transform_indices = @transform_3, window_bounds = array<i64: 16, 34>}, {transform_indices = @transform_4, window_bounds = array<i64: 1, 4, 256>}]} {
    %c4_i32 = arith.constant 4 : i32
    %0 = arith.muli %arg1, %c4_i32 : i32
    %1 = tpu.assume_multiple %0, 4 : i32
    %c0 = arith.constant 0 : index
    %2 = arith.index_cast %1 : i32 to index
    %c0_0 = arith.constant 0 : index
    %c0_1 = arith.constant 0 : index
    %3 = vector.load %arg2[%c0, %2, %c0_0, %c0_1] : memref<1x18x8x16xf32, #tpu.memory_space<vmem>>, vector<1x6x8x16xf32>
    %4 = vector.shape_cast %3 : vector<1x6x8x16xf32> to vector<6x8x16xf32>
    %c0_2 = arith.constant 0 : index
    %c0_3 = arith.constant 0 : index
    %5 = vector.load %arg5[%c0_2, %c0_3] : memref<16x34xf32, #tpu.memory_space<vmem>>, vector<16x34xf32>
    %6 = vector.shape_cast %5 : vector<16x34xf32> to vector<1x16x34xf32>
    %7 = vector.broadcast %6 : vector<1x16x34xf32> to vector<6x16x34xf32>
    "tpu.trace_start"() <{level = 10 : i32, message = "rck,rku->rcu"}> : () -> ()
    %cst = arith.constant dense<0.000000e+00> : vector<6x8x34xf32>
    %8 = tpu.matmul %4, %7, %cst {dimension_numbers = #tpu.dot_dimension_numbers<[2], [1], [1], [2], [0, 0, 0, 1, 1, 2], [0], [0]>} : vector<6x8x16xf32>, vector<6x16x34xf32>, vector<6x8x34xf32> -> vector<6x8x34xf32>
    "tpu.trace_stop"() : () -> ()
    %9 = vector.extract_strided_slice %8 {offsets = [0, 0, 0], sizes = [1, 8, 34], strides = [1, 1, 1]} : vector<6x8x34xf32> to vector<1x8x34xf32>
    %10 = vector.shape_cast %9 : vector<1x8x34xf32> to vector<8x34xf32>
    %c0_4 = arith.constant 0 : index
    %c0_5 = arith.constant 0 : index
    %c0_6 = arith.constant 0 : index
    %11 = vector.load %arg7[%c0_4, %c0_5, %c0_6] : memref<10x8x34xf32, #tpu.memory_space<vmem>>, vector<1x8x34xf32>
    %12 = vector.shape_cast %11 : vector<1x8x34xf32> to vector<8x34xf32>
    %13 = vector.shape_cast %10 : vector<8x34xf32> to vector<1x8x34xf32>
    tpu.vector_store %arg7[%c0_4, %c0_5, %c0_6], %13 {strides = array<i32>} : memref<10x8x34xf32, #tpu.memory_space<vmem>>, vector<1x8x34xf32>,
    %14 = vector.extract_strided_slice %8 {offsets = [1, 0, 0], sizes = [1, 8, 34], strides = [1, 1, 1]} : vector<6x8x34xf32> to vector<1x8x34xf32>
    %15 = vector.shape_cast %14 : vector<1x8x34xf32> to vector<8x34xf32>
    %c1 = arith.constant 1 : index
    %c0_7 = arith.constant 0 : index
    %c0_8 = arith.constant 0 : index
    %16 = vector.load %arg7[%c1, %c0_7, %c0_8] : memref<10x8x34xf32, #tpu.memory_space<vmem>>, vector<1x8x34xf32>
    %17 = vector.shape_cast %16 : vector<1x8x34xf32> to vector<8x34xf32>
    %18 = vector.shape_cast %15 : vector<8x34xf32> to vector<1x8x34xf32>
    tpu.vector_store %arg7[%c1, %c0_7, %c0_8], %18 {strides = array<i32>} : memref<10x8x34xf32, #tpu.memory_space<vmem>>, vector<1x8x34xf32>,
    %19 = vector.extract_strided_slice %8 {offsets = [1, 0, 0], sizes = [1, 8, 34], strides = [1, 1, 1]} : vector<6x8x34xf32> to vector<1x8x34xf32>
    %20 = vector.shape_cast %19 : vector<1x8x34xf32> to vector<8x34xf32>
    %c2 = arith.constant 2 : index
    %c0_9 = arith.constant 0 : index
    %c0_10 = arith.constant 0 : index
    %21 = vector.load %arg7[%c2, %c0_9, %c0_10] : memref<10x8x34xf32, #tpu.memory_space<vmem>>, vector<1x8x34xf32>
    %22 = vector.shape_cast %21 : vector<1x8x34xf32> to vector<8x34xf32>
    %23 = vector.shape_cast %20 : vector<8x34xf32> to vector<1x8x34xf32>
    tpu.vector_store %arg7[%c2, %c0_9, %c0_10], %23 {strides = array<i32>} : memref<10x8x34xf32, #tpu.memory_space<vmem>>, vector<1x8x34xf32>,
    %24 = vector.extract_strided_slice %8 {offsets = [2, 0, 0], sizes = [1, 8, 34], strides = [1, 1, 1]} : vector<6x8x34xf32> to vector<1x8x34xf32>
    %25 = vector.shape_cast %24 : vector<1x8x34xf32> to vector<8x34xf32>
    %c3 = arith.constant 3 : index
    %c0_11 = arith.constant 0 : index
    %c0_12 = arith.constant 0 : index
    %26 = vector.load %arg7[%c3, %c0_11, %c0_12] : memref<10x8x34xf32, #tpu.memory_space<vmem>>, vector<1x8x34xf32>
    %27 = vector.shape_cast %26 : vector<1x8x34xf32> to vector<8x34xf32>
    %28 = vector.shape_cast %25 : vector<8x34xf32> to vector<1x8x34xf32>
    tpu.vector_store %arg7[%c3, %c0_11, %c0_12], %28 {strides = array<i32>} : memref<10x8x34xf32, #tpu.memory_space<vmem>>, vector<1x8x34xf32>,
    %29 = vector.extract_strided_slice %8 {offsets = [2, 0, 0], sizes = [1, 8, 34], strides = [1, 1, 1]} : vector<6x8x34xf32> to vector<1x8x34xf32>
    %30 = vector.shape_cast %29 : vector<1x8x34xf32> to vector<8x34xf32>
    %c4 = arith.constant 4 : index
    %c0_13 = arith.constant 0 : index
    %c0_14 = arith.constant 0 : index
    %31 = vector.load %arg7[%c4, %c0_13, %c0_14] : memref<10x8x34xf32, #tpu.memory_space<vmem>>, vector<1x8x34xf32>
    %32 = vector.shape_cast %31 : vector<1x8x34xf32> to vector<8x34xf32>
    %33 = vector.shape_cast %30 : vector<8x34xf32> to vector<1x8x34xf32>
    tpu.vector_store %arg7[%c4, %c0_13, %c0_14], %33 {strides = array<i32>} : memref<10x8x34xf32, #tpu.memory_space<vmem>>, vector<1x8x34xf32>,
    %34 = vector.extract_strided_slice %8 {offsets = [3, 0, 0], sizes = [1, 8, 34], strides = [1, 1, 1]} : vector<6x8x34xf32> to vector<1x8x34xf32>
    %35 = vector.shape_cast %34 : vector<1x8x34xf32> to vector<8x34xf32>
    %c5 = arith.constant 5 : index
    %c0_15 = arith.constant 0 : index
    %c0_16 = arith.constant 0 : index
    %36 = vector.load %arg7[%c5, %c0_15, %c0_16] : memref<10x8x34xf32, #tpu.memory_space<vmem>>, vector<1x8x34xf32>
    %37 = vector.shape_cast %36 : vector<1x8x34xf32> to vector<8x34xf32>
    %38 = vector.shape_cast %35 : vector<8x34xf32> to vector<1x8x34xf32>
    tpu.vector_store %arg7[%c5, %c0_15, %c0_16], %38 {strides = array<i32>} : memref<10x8x34xf32, #tpu.memory_space<vmem>>, vector<1x8x34xf32>,
    %39 = vector.extract_strided_slice %8 {offsets = [3, 0, 0], sizes = [1, 8, 34], strides = [1, 1, 1]} : vector<6x8x34xf32> to vector<1x8x34xf32>
    %40 = vector.shape_cast %39 : vector<1x8x34xf32> to vector<8x34xf32>
    %c6 = arith.constant 6 : index
    %c0_17 = arith.constant 0 : index
    %c0_18 = arith.constant 0 : index
    %41 = vector.load %arg7[%c6, %c0_17, %c0_18] : memref<10x8x34xf32, #tpu.memory_space<vmem>>, vector<1x8x34xf32>
    %42 = vector.shape_cast %41 : vector<1x8x34xf32> to vector<8x34xf32>
    %43 = vector.shape_cast %40 : vector<8x34xf32> to vector<1x8x34xf32>
    tpu.vector_store %arg7[%c6, %c0_17, %c0_18], %43 {strides = array<i32>} : memref<10x8x34xf32, #tpu.memory_space<vmem>>, vector<1x8x34xf32>,
    %44 = vector.extract_strided_slice %8 {offsets = [4, 0, 0], sizes = [1, 8, 34], strides = [1, 1, 1]} : vector<6x8x34xf32> to vector<1x8x34xf32>
    %45 = vector.shape_cast %44 : vector<1x8x34xf32> to vector<8x34xf32>
    %c7 = arith.constant 7 : index
    %c0_19 = arith.constant 0 : index
    %c0_20 = arith.constant 0 : index
    %46 = vector.load %arg7[%c7, %c0_19, %c0_20] : memref<10x8x34xf32, #tpu.memory_space<vmem>>, vector<1x8x34xf32>
    %47 = vector.shape_cast %46 : vector<1x8x34xf32> to vector<8x34xf32>
    %48 = vector.shape_cast %45 : vector<8x34xf32> to vector<1x8x34xf32>
    tpu.vector_store %arg7[%c7, %c0_19, %c0_20], %48 {strides = array<i32>} : memref<10x8x34xf32, #tpu.memory_space<vmem>>, vector<1x8x34xf32>,
    %49 = vector.extract_strided_slice %8 {offsets = [4, 0, 0], sizes = [1, 8, 34], strides = [1, 1, 1]} : vector<6x8x34xf32> to vector<1x8x34xf32>
    %50 = vector.shape_cast %49 : vector<1x8x34xf32> to vector<8x34xf32>
    %c8 = arith.constant 8 : index
    %c0_21 = arith.constant 0 : index
    %c0_22 = arith.constant 0 : index
    %51 = vector.load %arg7[%c8, %c0_21, %c0_22] : memref<10x8x34xf32, #tpu.memory_space<vmem>>, vector<1x8x34xf32>
    %52 = vector.shape_cast %51 : vector<1x8x34xf32> to vector<8x34xf32>
    %53 = vector.shape_cast %50 : vector<8x34xf32> to vector<1x8x34xf32>
    tpu.vector_store %arg7[%c8, %c0_21, %c0_22], %53 {strides = array<i32>} : memref<10x8x34xf32, #tpu.memory_space<vmem>>, vector<1x8x34xf32>,
    %54 = vector.extract_strided_slice %8 {offsets = [5, 0, 0], sizes = [1, 8, 34], strides = [1, 1, 1]} : vector<6x8x34xf32> to vector<1x8x34xf32>
    %55 = vector.shape_cast %54 : vector<1x8x34xf32> to vector<8x34xf32>
    %c9 = arith.constant 9 : index
    %c0_23 = arith.constant 0 : index
    %c0_24 = arith.constant 0 : index
    %56 = vector.load %arg7[%c9, %c0_23, %c0_24] : memref<10x8x34xf32, #tpu.memory_space<vmem>>, vector<1x8x34xf32>
    %57 = vector.shape_cast %56 : vector<1x8x34xf32> to vector<8x34xf32>
    %58 = vector.shape_cast %55 : vector<8x34xf32> to vector<1x8x34xf32>
    tpu.vector_store %arg7[%c9, %c0_23, %c0_24], %58 {strides = array<i32>} : memref<10x8x34xf32, #tpu.memory_space<vmem>>, vector<1x8x34xf32>,
    %c0_25 = arith.constant 0 : index
    %c0_26 = arith.constant 0 : index
    %c0_27 = arith.constant 0 : index
    %59 = vector.load %arg7[%c0_25, %c0_26, %c0_27] : memref<10x8x34xf32, #tpu.memory_space<vmem>>, vector<8x8x32xf32>
    %c0_28 = arith.constant 0 : index
    %c0_29 = arith.constant 0 : index
    %c0_30 = arith.constant 0 : index
    %60 = vector.load %arg8[%c0_28, %c0_29, %c0_30] : memref<8x72x32xf32, #tpu.memory_space<vmem>>, vector<8x8x32xf32>
    tpu.vector_store %arg8[%c0_28, %c0_29, %c0_30], %59 {strides = array<i32>} : memref<8x72x32xf32, #tpu.memory_space<vmem>>, vector<8x8x32xf32>,
    %c0_31 = arith.constant 0 : index
    %c0_32 = arith.constant 0 : index
    %c1_33 = arith.constant 1 : index
    %61 = vector.load %arg7[%c0_31, %c0_32, %c1_33] : memref<10x8x34xf32, #tpu.memory_space<vmem>>, vector<8x8x32xf32>
    %c0_34 = arith.constant 0 : index
    %c8_35 = arith.constant 8 : index
    %c0_36 = arith.constant 0 : index
    %62 = vector.load %arg8[%c0_34, %c8_35, %c0_36] : memref<8x72x32xf32, #tpu.memory_space<vmem>>, vector<8x8x32xf32>
    tpu.vector_store %arg8[%c0_34, %c8_35, %c0_36], %61 {strides = array<i32>} : memref<8x72x32xf32, #tpu.memory_space<vmem>>, vector<8x8x32xf32>,
    %c0_37 = arith.constant 0 : index
    %c0_38 = arith.constant 0 : index
    %c2_39 = arith.constant 2 : index
    %63 = vector.load %arg7[%c0_37, %c0_38, %c2_39] : memref<10x8x34xf32, #tpu.memory_space<vmem>>, vector<8x8x32xf32>
    %c0_40 = arith.constant 0 : index
    %c16 = arith.constant 16 : index
    %c0_41 = arith.constant 0 : index
    %64 = vector.load %arg8[%c0_40, %c16, %c0_41] : memref<8x72x32xf32, #tpu.memory_space<vmem>>, vector<8x8x32xf32>
    tpu.vector_store %arg8[%c0_40, %c16, %c0_41], %63 {strides = array<i32>} : memref<8x72x32xf32, #tpu.memory_space<vmem>>, vector<8x8x32xf32>,
    %c1_42 = arith.constant 1 : index
    %c0_43 = arith.constant 0 : index
    %c0_44 = arith.constant 0 : index
    %65 = vector.load %arg7[%c1_42, %c0_43, %c0_44] : memref<10x8x34xf32, #tpu.memory_space<vmem>>, vector<8x8x32xf32>
    %c0_45 = arith.constant 0 : index
    %c24 = arith.constant 24 : index
    %c0_46 = arith.constant 0 : index
    %66 = vector.load %arg8[%c0_45, %c24, %c0_46] : memref<8x72x32xf32, #tpu.memory_space<vmem>>, vector<8x8x32xf32>
    tpu.vector_store %arg8[%c0_45, %c24, %c0_46], %65 {strides = array<i32>} : memref<8x72x32xf32, #tpu.memory_space<vmem>>, vector<8x8x32xf32>,
    %c1_47 = arith.constant 1 : index
    %c0_48 = arith.constant 0 : index
    %c1_49 = arith.constant 1 : index
    %67 = vector.load %arg7[%c1_47, %c0_48, %c1_49] : memref<10x8x34xf32, #tpu.memory_space<vmem>>, vector<8x8x32xf32>
    %c0_50 = arith.constant 0 : index
    %c32 = arith.constant 32 : index
    %c0_51 = arith.constant 0 : index
    %68 = vector.load %arg8[%c0_50, %c32, %c0_51] : memref<8x72x32xf32, #tpu.memory_space<vmem>>, vector<8x8x32xf32>
    tpu.vector_store %arg8[%c0_50, %c32, %c0_51], %67 {strides = array<i32>} : memref<8x72x32xf32, #tpu.memory_space<vmem>>, vector<8x8x32xf32>,
    %c1_52 = arith.constant 1 : index
    %c0_53 = arith.constant 0 : index
    %c2_54 = arith.constant 2 : index
    %69 = vector.load %arg7[%c1_52, %c0_53, %c2_54] : memref<10x8x34xf32, #tpu.memory_space<vmem>>, vector<8x8x32xf32>
    %c0_55 = arith.constant 0 : index
    %c40 = arith.constant 40 : index
    %c0_56 = arith.constant 0 : index
    %70 = vector.load %arg8[%c0_55, %c40, %c0_56] : memref<8x72x32xf32, #tpu.memory_space<vmem>>, vector<8x8x32xf32>
    tpu.vector_store %arg8[%c0_55, %c40, %c0_56], %69 {strides = array<i32>} : memref<8x72x32xf32, #tpu.memory_space<vmem>>, vector<8x8x32xf32>,
    %c2_57 = arith.constant 2 : index
    %c0_58 = arith.constant 0 : index
    %c0_59 = arith.constant 0 : index
    %71 = vector.load %arg7[%c2_57, %c0_58, %c0_59] : memref<10x8x34xf32, #tpu.memory_space<vmem>>, vector<8x8x32xf32>
    %c0_60 = arith.constant 0 : index
    %c48 = arith.constant 48 : index
    %c0_61 = arith.constant 0 : index
    %72 = vector.load %arg8[%c0_60, %c48, %c0_61] : memref<8x72x32xf32, #tpu.memory_space<vmem>>, vector<8x8x32xf32>
    tpu.vector_store %arg8[%c0_60, %c48, %c0_61], %71 {strides = array<i32>} : memref<8x72x32xf32, #tpu.memory_space<vmem>>, vector<8x8x32xf32>,
    %c2_62 = arith.constant 2 : index
    %c0_63 = arith.constant 0 : index
    %c1_64 = arith.constant 1 : index
    %73 = vector.load %arg7[%c2_62, %c0_63, %c1_64] : memref<10x8x34xf32, #tpu.memory_space<vmem>>, vector<8x8x32xf32>
    %c0_65 = arith.constant 0 : index
    %c56 = arith.constant 56 : index
    %c0_66 = arith.constant 0 : index
    %74 = vector.load %arg8[%c0_65, %c56, %c0_66] : memref<8x72x32xf32, #tpu.memory_space<vmem>>, vector<8x8x32xf32>
    tpu.vector_store %arg8[%c0_65, %c56, %c0_66], %73 {strides = array<i32>} : memref<8x72x32xf32, #tpu.memory_space<vmem>>, vector<8x8x32xf32>,
    %c2_67 = arith.constant 2 : index
    %c0_68 = arith.constant 0 : index
    %c2_69 = arith.constant 2 : index
    %75 = vector.load %arg7[%c2_67, %c0_68, %c2_69] : memref<10x8x34xf32, #tpu.memory_space<vmem>>, vector<8x8x32xf32>
    %c0_70 = arith.constant 0 : index
    %c64 = arith.constant 64 : index
    %c0_71 = arith.constant 0 : index
    %76 = vector.load %arg8[%c0_70, %c64, %c0_71] : memref<8x72x32xf32, #tpu.memory_space<vmem>>, vector<8x8x32xf32>
    tpu.vector_store %arg8[%c0_70, %c64, %c0_71], %75 {strides = array<i32>} : memref<8x72x32xf32, #tpu.memory_space<vmem>>, vector<8x8x32xf32>,
    %c0_72 = arith.constant 0 : index
    %c0_73 = arith.constant 0 : index
    %77 = vector.load %arg3[%c0_72, %c0_73] : memref<4x72xf32, #tpu.memory_space<vmem>>, vector<4x72xf32>
    %78 = vector.shape_cast %77 : vector<4x72xf32> to vector<1x4x72xf32>
    %79 = vector.broadcast %78 : vector<1x4x72xf32> to vector<8x4x72xf32>
    %c0_74 = arith.constant 0 : index
    %c0_75 = arith.constant 0 : index
    %c0_76 = arith.constant 0 : index
    %80 = vector.load %arg8[%c0_74, %c0_75, %c0_76] : memref<8x72x32xf32, #tpu.memory_space<vmem>>, vector<8x72x32xf32>
    "tpu.trace_start"() <{level = 10 : i32, message = "qok,qkc->qoc"}> : () -> ()
    %cst_77 = arith.constant dense<0.000000e+00> : vector<8x4x32xf32>
    %81 = tpu.matmul %79, %80, %cst_77 {dimension_numbers = #tpu.dot_dimension_numbers<[2], [1], [1], [2], [0, 0, 0, 1, 1, 2], [0], [0]>} : vector<8x4x72xf32>, vector<8x72x32xf32>, vector<8x4x32xf32> -> vector<8x4x32xf32>
    "tpu.trace_stop"() : () -> ()
    %c0_78 = arith.constant 0 : index
    %c0_79 = arith.constant 0 : index
    %82 = vector.load %arg4[%c0_78, %c0_79] : memref<4x1xf32, #tpu.memory_space<vmem>>, vector<4x1xf32>
    %83 = vector.shape_cast %82 : vector<4x1xf32> to vector<1x4x1xf32>
    %84 = vector.broadcast %83 : vector<1x4x1xf32> to vector<8x4x32xf32>
    %85 = arith.addf %81, %84 : vector<8x4x32xf32>
    %86 = vector.extract_strided_slice %85 {offsets = [0, 0, 0], sizes = [1, 4, 32], strides = [1, 1, 1]} : vector<8x4x32xf32> to vector<1x4x32xf32>
    %87 = vector.shape_cast %86 : vector<1x4x32xf32> to vector<4x32xf32>
    %88 = vector.extract_strided_slice %85 {offsets = [1, 0, 0], sizes = [1, 4, 32], strides = [1, 1, 1]} : vector<8x4x32xf32> to vector<1x4x32xf32>
    %89 = vector.shape_cast %88 : vector<1x4x32xf32> to vector<4x32xf32>
    %90 = vector.extract_strided_slice %85 {offsets = [2, 0, 0], sizes = [1, 4, 32], strides = [1, 1, 1]} : vector<8x4x32xf32> to vector<1x4x32xf32>
    %91 = vector.shape_cast %90 : vector<1x4x32xf32> to vector<4x32xf32>
    %92 = vector.extract_strided_slice %85 {offsets = [3, 0, 0], sizes = [1, 4, 32], strides = [1, 1, 1]} : vector<8x4x32xf32> to vector<1x4x32xf32>
    %93 = vector.shape_cast %92 : vector<1x4x32xf32> to vector<4x32xf32>
    %94 = vector.extract_strided_slice %85 {offsets = [4, 0, 0], sizes = [1, 4, 32], strides = [1, 1, 1]} : vector<8x4x32xf32> to vector<1x4x32xf32>
    %95 = vector.shape_cast %94 : vector<1x4x32xf32> to vector<4x32xf32>
    %96 = vector.extract_strided_slice %85 {offsets = [5, 0, 0], sizes = [1, 4, 32], strides = [1, 1, 1]} : vector<8x4x32xf32> to vector<1x4x32xf32>
    %97 = vector.shape_cast %96 : vector<1x4x32xf32> to vector<4x32xf32>
    %98 = vector.extract_strided_slice %85 {offsets = [6, 0, 0], sizes = [1, 4, 32], strides = [1, 1, 1]} : vector<8x4x32xf32> to vector<1x4x32xf32>
    %99 = vector.shape_cast %98 : vector<1x4x32xf32> to vector<4x32xf32>
    %100 = vector.extract_strided_slice %85 {offsets = [7, 0, 0], sizes = [1, 4, 32], strides = [1, 1, 1]} : vector<8x4x32xf32> to vector<1x4x32xf32>
    %101 = vector.shape_cast %100 : vector<1x4x32xf32> to vector<4x32xf32>
    %102 = tpu.concatenate %87, %89, %91, %93, %95, %97, %99, %101 in 1 : vector<4x32xf32>, vector<4x32xf32>, vector<4x32xf32>, vector<4x32xf32>, vector<4x32xf32>, vector<4x32xf32>, vector<4x32xf32>, vector<4x32xf32> -> vector<4x256xf32>
    %c0_80 = arith.constant 0 : index
    %c0_81 = arith.constant 0 : index
    %c0_82 = arith.constant 0 : index
    %103 = vector.load %arg6[%c0_80, %c0_81, %c0_82] : memref<1x4x256xf32, #tpu.memory_space<vmem>>, vector<1x4x256xf32>
    %104 = vector.shape_cast %103 : vector<1x4x256xf32> to vector<4x256xf32>
    %105 = vector.shape_cast %102 : vector<4x256xf32> to vector<1x4x256xf32>
    tpu.vector_store %arg6[%c0_80, %c0_81, %c0_82], %105 {strides = array<i32>} : memref<1x4x256xf32, #tpu.memory_space<vmem>>, vector<1x4x256xf32>,
    return
  }
  func.func @transform_0(%arg0: i32, %arg1: i32) -> (i32, i32, i32, i32) {
    %c0_i32 = arith.constant 0 : i32
    %c0_i32_0 = arith.constant 0 : i32
    %c0_i32_1 = arith.constant 0 : i32
    %c0_i32_2 = arith.constant 0 : i32
    return %arg0, %c0_i32, %c0_i32_0, %c0_i32_1 : i32, i32, i32, i32
  }
  func.func @transform_1(%arg0: i32, %arg1: i32) -> (i32, i32) {
    %c0_i32 = arith.constant 0 : i32
    %c0_i32_0 = arith.constant 0 : i32
    %c0_i32_1 = arith.constant 0 : i32
    return %c0_i32, %c0_i32_0 : i32, i32
  }
  func.func @transform_2(%arg0: i32, %arg1: i32) -> (i32, i32) {
    %c0_i32 = arith.constant 0 : i32
    %c0_i32_0 = arith.constant 0 : i32
    %c0_i32_1 = arith.constant 0 : i32
    return %c0_i32, %c0_i32_0 : i32, i32
  }
  func.func @transform_3(%arg0: i32, %arg1: i32) -> (i32, i32) {
    %c0_i32 = arith.constant 0 : i32
    %c0_i32_0 = arith.constant 0 : i32
    %c0_i32_1 = arith.constant 0 : i32
    return %c0_i32, %c0_i32_0 : i32, i32
  }
  func.func @transform_4(%arg0: i32, %arg1: i32) -> (i32, i32, i32) {
    %c0_i32 = arith.constant 0 : i32
    %c0_i32_0 = arith.constant 0 : i32
    return %arg0, %c0_i32, %arg1 : i32, i32, i32
  }
}

</mosaic_0001>

<llo_original>
// kernel: tpu_custom_call.1
$region0: #{tpu_custom_call.1}
  #allocation0 [shape = 'u32[]', space=smem, size = 0x4, offset = 0x4, fixed_abs, tag = 'smem constant byte address 0x4 - core index']
  #allocation1 [shape = 'u32[144,128]{1,0:T(1,128)}', space=vmem, size = 0x12000, scoped, tag = 'internal scratch']
  #allocation2 [shape = 'f32[10,8,34]{2,1,0:T(8,128)}', space=vmem, size = 0xa000, scoped, tag = 'scratch operand']
  #allocation3 [shape = 'f32[8,72,32]{2,1,0:T(8,128)}', space=vmem, size = 0x48000, scoped, tag = 'scratch operand']
  %s0 = inlined_call_operand.vmem [shape: f32[2,18,8,16], index: 0, kind: input, shape index: {}]
  %s1 = inlined_call_operand.vmem [shape: f32[4,72], index: 1, kind: input, shape index: {}]
  %s2 = inlined_call_operand.vmem [shape: f32[4,1], index: 2, kind: input, shape index: {}]
  %s3 = inlined_call_operand.vmem [shape: f32[16,34], index: 3, kind: input, shape index: {}]
  %s4 = inlined_call_operand.hbm [shape: f32[2,4,1024], index: 4, kind: output, shape index: {}]
  %s5 = sld [smem:[#allocation0]]
  $region49: #{tpu_custom_call.1} parent=0
    _
  %s7 = ssub.s32 1, %s5
  %s8 = scalar_select 0, %s7, %s5
  $region1: #{tpu_custom_call.1} parent=0
    #allocation4 [shape = 'u8[8192]{0}', space=vmem, size = 0x2000, scoped, tag = 'output window, operand 0']
    #allocation5 [shape = 's32[2]{0}', space=sflag, size = 0x8, scoped, tag = 'scoped memory for tpu_custom_call.1']
    %9 = vsyncpa [#allocation5], 0
    %s10 = scalar_lea.sflag [#allocation5], 1
    %11 = vsyncpa %s10, 0
    loop: start=0, step=1, limit=10
    $region2: #{tpu_custom_call.1} parent=1 // loop_pre_header
      _
    $region3: #{tpu_custom_call.1} parent=1 // loop_header
      %s13 = sphi 0, %s17
      %p14 = scmp.ge.s32.totalorder %s13, 10
      %s20 = sphi 0, %s32
      %s21 = sphi 0, %s28
      %s22 = sphi 0, %s20
      %s23 = sphi 0, %s21
      %s24 = sphi 0, %s22
      %s25 = sphi 0, %s23
      %s35 = sphi 0, %s37
      %s38 = sphi 0, %s35
      %s39 = sphi 0, %s38
      %s55 = sphi 0, %s39
      %s59 = sphi 0, %s59
      %s61 = sphi 0, %s59
      %s62 = sphi 0, %s61
      %s76 = sphi 0, %s62
      %s80 = sphi 0, %s80
      %s82 = sphi 0, %s80
      %s83 = sphi 0, %s82
      %s97 = sphi 0, %s83
      %s101 = sphi 0, %s101
      %s103 = sphi 0, %s101
      %s104 = sphi 0, %s103
      %s118 = sphi 0, %s104
      %s126 = sphi 0, %s128
      %s129 = sphi 0, %s126
      %s130 = sphi 0, %s129
      %s146 = sphi 0, %s130
    $region4: #{tpu_custom_call.1} parent=1 // loop_header_branch
      %16 = sbr.rel (%p14) target = $region8
    $region5: #{tpu_custom_call.1} parent=1 // loop_body
      %s18 = ssub.s32 %s13, 1
      %s19 = ssub.s32 %s13, 2
      %s26 = sadd.s32 1, %s21
      %p27 = scmp.ge.s32.totalorder %s26, 4
      %s28 = scalar_select %p27, 0, %s26
      %s29 = sadd.s32 1, %s20
      %s30 = scalar_select %p27, %s29, %s20
      %p31 = scmp.ge.s32.totalorder %s30, 2
      %s32 = scalar_select %p31, 0, %s30
      %s33 = ssub.s32 %s20, %s32
      %p34 = scmp.eq.s32.totalorder %s33, 0
      %s36 = sadd.s32 %s35, 1
      %s37 = scalar_select %p34, %s35, %s36
      %p40 = pneg %p34
      %p41 = scmp.eq.s32.totalorder %s13, 7
      %p42 = por %p40, %p41
      %p43 = scmp.ne.s32.totalorder %s35, %s38
      %p44 = scmp.eq.s32.totalorder %s13, 0
      %p45 = por %p43, %p44
      %p46 = scmp.ne.s32.totalorder %s35, %s38
      %p47 = scmp.eq.s32.totalorder %s18, 7
      %p48 = por %p46, %p47
      %p49 = scmp.ne.s32.totalorder %s38, %s39
      %p50 = scmp.eq.s32.totalorder %s18, 0
      %p51 = por %p49, %p50
      %p52 = scmp.ne.s32.totalorder %s38, %s39
      %p53 = scmp.eq.s32.totalorder %s19, 7
      %p54 = por %p52, %p53
      %p56 = scmp.ne.s32.totalorder %s39, %s55
      %p57 = scmp.eq.s32.totalorder %s19, 0
      %p58 = por %p56, %p57
      %s60 = sadd.s32 %s59, 1
      %p63 = scmp.eq.s32.totalorder %s13, 7
      %p64 = scmp.ne.s32.totalorder %s59, %s61
      %p65 = scmp.eq.s32.totalorder %s13, 0
      %p66 = por %p64, %p65
      %p67 = scmp.ne.s32.totalorder %s59, %s61
      %p68 = scmp.eq.s32.totalorder %s18, 7
      %p69 = por %p67, %p68
      %p70 = scmp.ne.s32.totalorder %s61, %s62
      %p71 = scmp.eq.s32.totalorder %s18, 0
      %p72 = por %p70, %p71
      %p73 = scmp.ne.s32.totalorder %s61, %s62
      %p74 = scmp.eq.s32.totalorder %s19, 7
      %p75 = por %p73, %p74
      %p77 = scmp.ne.s32.totalorder %s62, %s76
      %p78 = scmp.eq.s32.totalorder %s19, 0
      %p79 = por %p77, %p78
      %s81 = sadd.s32 %s80, 1
      %p84 = scmp.eq.s32.totalorder %s13, 7
      %p85 = scmp.ne.s32.totalorder %s80, %s82
      %p86 = scmp.eq.s32.totalorder %s13, 0
      %p87 = por %p85, %p86
      %p88 = scmp.ne.s32.totalorder %s80, %s82
      %p89 = scmp.eq.s32.totalorder %s18, 7
      %p90 = por %p88, %p89
      %p91 = scmp.ne.s32.totalorder %s82, %s83
      %p92 = scmp.eq.s32.totalorder %s18, 0
      %p93 = por %p91, %p92
      %p94 = scmp.ne.s32.totalorder %s82, %s83
      %p95 = scmp.eq.s32.totalorder %s19, 7
      %p96 = por %p94, %p95
      %p98 = scmp.ne.s32.totalorder %s83, %s97
      %p99 = scmp.eq.s32.totalorder %s19, 0
      %p100 = por %p98, %p99
      %s102 = sadd.s32 %s101, 1
      %p105 = scmp.eq.s32.totalorder %s13, 7
      %p106 = scmp.ne.s32.totalorder %s101, %s103
      %p107 = scmp.eq.s32.totalorder %s13, 0
      %p108 = por %p106, %p107
      %p109 = scmp.ne.s32.totalorder %s101, %s103
      %p110 = scmp.eq.s32.totalorder %s18, 7
      %p111 = por %p109, %p110
      %p112 = scmp.ne.s32.totalorder %s103, %s104
      %p113 = scmp.eq.s32.totalorder %s18, 0
      %p114 = por %p112, %p113
      %p115 = scmp.ne.s32.totalorder %s103, %s104
      %p116 = scmp.eq.s32.totalorder %s19, 7
      %p117 = por %p115, %p116
      %p119 = scmp.ne.s32.totalorder %s104, %s118
      %p120 = scmp.eq.s32.totalorder %s19, 0
      %p121 = por %p119, %p120
      %s122 = ssub.s32 %s20, %s32
      %s123 = ssub.s32 %s21, %s28
      %s124 = sor.u32 %s122, %s123
      %p125 = scmp.eq.s32.totalorder %s124, 0
      %s127 = sadd.s32 %s126, 1
      %s128 = scalar_select %p125, %s126, %s127
      %p131 = pneg %p125
      %p132 = scmp.eq.s32.totalorder %s13, 7
      %p133 = por %p131, %p132
      %p134 = scmp.ne.s32.totalorder %s126, %s129
      %p135 = scmp.eq.s32.totalorder %s13, 0
      %p136 = por %p134, %p135
      %p137 = scmp.ne.s32.totalorder %s126, %s129
      %p138 = scmp.eq.s32.totalorder %s18, 7
      %p139 = por %p137, %p138
      %p140 = scmp.ne.s32.totalorder %s129, %s130
      %p141 = scmp.eq.s32.totalorder %s18, 0
      %p142 = por %p140, %p141
      %p143 = scmp.ne.s32.totalorder %s129, %s130
      %p144 = scmp.eq.s32.totalorder %s19, 7
      %p145 = por %p143, %p144
      %p147 = scmp.ne.s32.totalorder %s130, %s146
      %p148 = scmp.eq.s32.totalorder %s19, 0
      %p149 = por %p147, %p148
      %p150 = scmp.le.s32.totalorder 1, %s13
      %p151 = scmp.lt.s32.totalorder %s13, 9
      %p152 = pnand %p150, %p151
      %p153 = pneg %p152
      // Predicated region
      $region9: #{tpu_custom_call.1} parent=5 // pred_check
        _
      $region10: #{tpu_custom_call.1} parent=5 // pred_check_branch
        %155 = sbr.rel (%p152) target = $region12
      $region11: #{tpu_custom_call.1} parent=5 // pred_region
        %s156 = ssub.s32 %s13, 1
        // Predicated region
        $region13: #{tpu_custom_call.1} parent=11 // pred_check
          %p157 = pneg %p72
        $region14: #{tpu_custom_call.1} parent=11 // pred_check_branch
          %159 = sbr.rel (%p157) target = $region16
        $region15: #{tpu_custom_call.1} parent=11 // pred_region
          _
        $region16: #{tpu_custom_call.1} parent=11 // pred_fallthru
          _
        // Predicated region
        $region17: #{tpu_custom_call.1} parent=11 // pred_check
          %p160 = pneg %p93
        $region18: #{tpu_custom_call.1} parent=11 // pred_check_branch
          %162 = sbr.rel (%p160) target = $region20
        $region19: #{tpu_custom_call.1} parent=11 // pred_region
          _
        $region20: #{tpu_custom_call.1} parent=11 // pred_fallthru
          _
        // Predicated region
        $region21: #{tpu_custom_call.1} parent=11 // pred_check
          %p163 = pneg %p114
        $region22: #{tpu_custom_call.1} parent=11 // pred_check_branch
          %165 = sbr.rel (%p163) target = $region24
        $region23: #{tpu_custom_call.1} parent=11 // pred_region
          _
        $region24: #{tpu_custom_call.1} parent=11 // pred_fallthru
          _
      $region12: #{tpu_custom_call.1} parent=5 // pred_fallthru
        _
      %p166 = scmp.lt.s32.totalorder %s13, 8
      // Predicated region
      $region25: #{tpu_custom_call.1} parent=5 // pred_check
        %p167 = pneg %p166
      $region26: #{tpu_custom_call.1} parent=5 // pred_check_branch
        %169 = sbr.rel (%p167) target = $region28
      $region27: #{tpu_custom_call.1} parent=5 // pred_region
        // Predicated region
        $region29: #{tpu_custom_call.1} parent=27 // pred_check
          %p170 = pneg %p45
        $region30: #{tpu_custom_call.1} parent=27 // pred_check_branch
          %172 = sbr.rel (%p170) target = $region32
        $region31: #{tpu_custom_call.1} parent=27 // pred_region
          %p173 = scmp.lt.s32.totalorder %s20, 1
          %s174 = scalar_select %p173, %s20, 1
          %s175 = smul.addr %s174, 18
          %s176 = smul.addr %s175, 8
          %s177 = scalar_lea.vmem %s0, %s176
        $region32: #{tpu_custom_call.1} parent=27 // pred_fallthru
          _
      $region28: #{tpu_custom_call.1} parent=5 // pred_fallthru
        _
      %p178 = scmp.le.s32.totalorder 1, %s13
      %p179 = scmp.lt.s32.totalorder %s13, 9
      %p180 = pnand %p178, %p179
      %p181 = pneg %p180
      // Predicated region
      $region33: #{tpu_custom_call.1} parent=5 // pred_check
        _
      $region34: #{tpu_custom_call.1} parent=5 // pred_check_branch
        %183 = sbr.rel (%p180) target = $region36
      $region35: #{tpu_custom_call.1} parent=5 // pred_region
        %s184 = ssub.s32 %s13, 1
        %p185 = scmp.lt.s32.totalorder %s22, 1
        %s186 = scalar_select %p185, %s22, 1
        %s187 = smul.addr %s186, 18
        %s188 = smul.addr %s187, 8
        %s189 = scalar_lea.vmem %s0, %s188
        %p190 = pneg %p51
        %p191 = pneg %p48
        %p192 = pneg %p72
        %p193 = pneg %p69
        %p194 = pneg %p93
        %p195 = pneg %p90
        %p196 = pneg %p114
        %p197 = pneg %p111
        %p198 = pneg %p142
        %p199 = pneg %p139
        %s200 = sand.u32 %s129, 1
        %s201 = scalar_lea.sflag [#allocation5], %s200
        %s202 = sand.u32 %s129, 1
        %s203 = smul.addr %s202, 8
        %s204 = scalar_lea.vmem [#allocation4], %s203
        %p205 = scmp.lt.s32.totalorder %s22, 1
        %s206 = scalar_select %p205, %s22, 1
        %s207 = smul.addr %s206, 18
        %s208 = smul.addr %s207, 8
        %s209 = scalar_lea.vmem %s0, %s208
        %s210 = smul.u32 2, %s23
        %s211 = smul.u32 %s23, 4
        %s212 = smul.u32 %s211, 8
        %s213 = scalar_lea.vmem %s209, %s212
        %v214 = vld [vmem:[%s213] sm:$0xff]
        %v215 = vld [vmem:[%s213 + $0x8] sm:$0xff]
        %v216 = vld [vmem:[%s213 + $0x10] sm:$0xff]
        %v217 = vld [vmem:[%s213 + $0x18] sm:$0xff]
        %v218 = vld [vmem:[%s213 + $0x20] sm:$0xff]
        %v219 = vld [vmem:[%s213 + $0x28] sm:$0xff]
        %v220 = vld [vmem:[%s3] sm:$0xff]
        %v221 = vld [vmem:[%s3 + $0x8] sm:$0xff]
        %vm222 = vcmask 130048
        %v224 = vsel %vm222, %v214, 0
        %226 = vmatprep.subr.mxu0 0.0
        %227 = vmatpush1.msra.mxu0 0.0
        %228 = vmatprep.subr.mxu0 0.0
        %229 = vmatpush1.msra.mxu0 0.0
        %230 = vmatprep.subr.mxu0 0.0
        %231 = vmatpush1.msra.mxu0 0.0
        %232 = vmatprep.subr.mxu0 0.0
        %233 = vmatpush1.msra.mxu0 0.0
        %234 = vmatprep.subr.mxu0 0.0
        %235 = vmatpush1.msra.mxu0 0.0
        %236 = vmatprep.subr.mxu0 0.0
        %237 = vmatpush1.msra.mxu0 0.0
        %238 = vmatprep.subr.mxu0 0.0
        %239 = vmatpush1.msra.mxu0 0.0
        %240 = vmatprep.subr.mxu0 0.0
        %241 = vmatpush1.msra.mxu0 0.0
        %242 = vmatprep.subr.mxu0 0.0
        %243 = vmatpush1.msra.mxu0 0.0
        %244 = vmatprep.subr.mxu0 0.0
        %245 = vmatpush1.msra.mxu0 0.0
        %246 = vmatprep.subr.mxu0 0.0
        %247 = vmatpush1.msra.mxu0 0.0
        %248 = vmatprep.subr.mxu0 0.0
        %249 = vmatpush1.msra.mxu0 0.0
        %250 = vmatprep.subr.mxu0 0.0
        %251 = vmatpush1.msra.mxu0 0.0
        %252 = vmatprep.subr.mxu0 0.0
        %253 = vmatpush1.msra.mxu0 0.0
        %254 = vmatprep.subr.mxu0 0.0
        %255 = vmatpush1.msra.mxu0 %v221
        %256 = vmatprep.subr.mxu0 0.0
        %257 = vmatpush1.msra.mxu0 %v220
        %258 = vmatprep.subr.mxu0 0.0
        %259 = vmatpush2.msra.mxu0 0.0
        %260 = vmatprep.subr.mxu0 0.0
        %261 = vmatpush2.msra.mxu0 0.0
        %262 = vmatprep.subr.mxu0 0.0
        %263 = vmatpush2.msra.mxu0 0.0
        %264 = vmatprep.subr.mxu0 0.0
        %265 = vmatpush2.msra.mxu0 0.0
        %266 = vmatprep.subr.mxu0 0.0
        %267 = vmatpush2.msra.mxu0 0.0
        %268 = vmatprep.subr.mxu0 0.0
        %269 = vmatpush2.msra.mxu0 0.0
        %270 = vmatprep.subr.mxu0 0.0
        %271 = vmatpush2.msra.mxu0 0.0
        %272 = vmatprep.subr.mxu0 0.0
        %273 = vmatpush2.msra.mxu0 0.0
        %274 = vmatprep.subr.mxu0 0.0
        %275 = vmatpush2.msra.mxu0 0.0
        %276 = vmatprep.subr.mxu0 0.0
        %277 = vmatpush2.msra.mxu0 0.0
        %278 = vmatprep.subr.mxu0 0.0
        %279 = vmatpush2.msra.mxu0 0.0
        %280 = vmatprep.subr.mxu0 0.0
        %281 = vmatpush2.msra.mxu0 0.0
        %282 = vmatprep.subr.mxu0 0.0
        %283 = vmatpush2.msra.mxu0 0.0
        %284 = vmatprep.subr.mxu0 0.0
        %285 = vmatpush2.msra.mxu0 0.0
        %286 = vmatprep.subr.mxu0 0.0
        %287 = vmatpush2.msra.mxu0 0.0
        %288 = vmatprep.subr.mxu0 0.0
        %289 = vmatpush2.msra.mxu0 0.0
        %290 = vmatprep.mubr.f32.mxu0 0.0
        %291 = vmatmul.mubr.f32.gmra.mxu0 %v224
        %v292 = vpop.f32.mrf.mxu0
        %v293 = vadd.f32 0.0, %v292
        %v294 = vpop.f32.mrf.mxu0
        %295 = vdwg.mxu0
        %v297 = vsel %vm222, %v215, 0
        %299 = vmatprep.subr.mxu0 0.0
        %300 = vmatpush1.msra.mxu0 0.0
        %301 = vmatprep.subr.mxu0 0.0
        %302 = vmatpush1.msra.mxu0 0.0
        %303 = vmatprep.subr.mxu0 0.0
        %304 = vmatpush1.msra.mxu0 0.0
        %305 = vmatprep.subr.mxu0 0.0
        %306 = vmatpush1.msra.mxu0 0.0
        %307 = vmatprep.subr.mxu0 0.0
        %308 = vmatpush1.msra.mxu0 0.0
        %309 = vmatprep.subr.mxu0 0.0
        %310 = vmatpush1.msra.mxu0 0.0
        %311 = vmatprep.subr.mxu0 0.0
        %312 = vmatpush1.msra.mxu0 0.0
        %313 = vmatprep.subr.mxu0 0.0
        %314 = vmatpush1.msra.mxu0 0.0
        %315 = vmatprep.subr.mxu0 0.0
        %316 = vmatpush1.msra.mxu0 0.0
        %317 = vmatprep.subr.mxu0 0.0
        %318 = vmatpush1.msra.mxu0 0.0
        %319 = vmatprep.subr.mxu0 0.0
        %320 = vmatpush1.msra.mxu0 0.0
        %321 = vmatprep.subr.mxu0 0.0
        %322 = vmatpush1.msra.mxu0 0.0
        %323 = vmatprep.subr.mxu0 0.0
        %324 = vmatpush1.msra.mxu0 0.0
        %325 = vmatprep.subr.mxu0 0.0
        %326 = vmatpush1.msra.mxu0 0.0
        %327 = vmatprep.subr.mxu0 0.0
        %328 = vmatpush1.msra.mxu0 %v221
        %329 = vmatprep.subr.mxu0 0.0
        %330 = vmatpush1.msra.mxu0 %v220
        %331 = vmatprep.subr.mxu0 0.0
        %332 = vmatpush2.msra.mxu0 0.0
        %333 = vmatprep.subr.mxu0 0.0
        %334 = vmatpush2.msra.mxu0 0.0
        %335 = vmatprep.subr.mxu0 0.0
        %336 = vmatpush2.msra.mxu0 0.0
        %337 = vmatprep.subr.mxu0 0.0
        %338 = vmatpush2.msra.mxu0 0.0
        %339 = vmatprep.subr.mxu0 0.0
        %340 = vmatpush2.msra.mxu0 0.0
        %341 = vmatprep.subr.mxu0 0.0
        %342 = vmatpush2.msra.mxu0 0.0
        %343 = vmatprep.subr.mxu0 0.0
        %344 = vmatpush2.msra.mxu0 0.0
        %345 = vmatprep.subr.mxu0 0.0
        %346 = vmatpush2.msra.mxu0 0.0
        %347 = vmatprep.subr.mxu0 0.0
        %348 = vmatpush2.msra.mxu0 0.0
        %349 = vmatprep.subr.mxu0 0.0
        %350 = vmatpush2.msra.mxu0 0.0
        %351 = vmatprep.subr.mxu0 0.0
        %352 = vmatpush2.msra.mxu0 0.0
        %353 = vmatprep.subr.mxu0 0.0
        %354 = vmatpush2.msra.mxu0 0.0
        %355 = vmatprep.subr.mxu0 0.0
        %356 = vmatpush2.msra.mxu0 0.0
        %357 = vmatprep.subr.mxu0 0.0
        %358 = vmatpush2.msra.mxu0 0.0
        %359 = vmatprep.subr.mxu0 0.0
        %360 = vmatpush2.msra.mxu0 0.0
        %361 = vmatprep.subr.mxu0 0.0
        %362 = vmatpush2.msra.mxu0 0.0
        %363 = vmatprep.mubr.f32.mxu0 0.0
        %364 = vmatmul.mubr.f32.gmra.mxu0 %v297
        %v365 = vpop.f32.mrf.mxu0
        %v366 = vadd.f32 0.0, %v365
        %v367 = vpop.f32.mrf.mxu0
        %368 = vdwg.mxu0
        %v370 = vsel %vm222, %v216, 0
        %372 = vmatprep.subr.mxu0 0.0
        %373 = vmatpush1.msra.mxu0 0.0
        %374 = vmatprep.subr.mxu0 0.0
        %375 = vmatpush1.msra.mxu0 0.0
        %376 = vmatprep.subr.mxu0 0.0
        %377 = vmatpush1.msra.mxu0 0.0
        %378 = vmatprep.subr.mxu0 0.0
        %379 = vmatpush1.msra.mxu0 0.0
        %380 = vmatprep.subr.mxu0 0.0
        %381 = vmatpush1.msra.mxu0 0.0
        %382 = vmatprep.subr.mxu0 0.0
        %383 = vmatpush1.msra.mxu0 0.0
        %384 = vmatprep.subr.mxu0 0.0
        %385 = vmatpush1.msra.mxu0 0.0
        %386 = vmatprep.subr.mxu0 0.0
        %387 = vmatpush1.msra.mxu0 0.0
        %388 = vmatprep.subr.mxu0 0.0
        %389 = vmatpush1.msra.mxu0 0.0
        %390 = vmatprep.subr.mxu0 0.0
        %391 = vmatpush1.msra.mxu0 0.0
        %392 = vmatprep.subr.mxu0 0.0
        %393 = vmatpush1.msra.mxu0 0.0
        %394 = vmatprep.subr.mxu0 0.0
        %395 = vmatpush1.msra.mxu0 0.0
        %396 = vmatprep.subr.mxu0 0.0
        %397 = vmatpush1.msra.mxu0 0.0
        %398 = vmatprep.subr.mxu0 0.0
        %399 = vmatpush1.msra.mxu0 0.0
        %400 = vmatprep.subr.mxu0 0.0
        %401 = vmatpush1.msra.mxu0 %v221
        %402 = vmatprep.subr.mxu0 0.0
        %403 = vmatpush1.msra.mxu0 %v220
        %404 = vmatprep.subr.mxu0 0.0
        %405 = vmatpush2.msra.mxu0 0.0
        %406 = vmatprep.subr.mxu0 0.0
        %407 = vmatpush2.msra.mxu0 0.0
        %408 = vmatprep.subr.mxu0 0.0
        %409 = vmatpush2.msra.mxu0 0.0
        %410 = vmatprep.subr.mxu0 0.0
        %411 = vmatpush2.msra.mxu0 0.0
        %412 = vmatprep.subr.mxu0 0.0
        %413 = vmatpush2.msra.mxu0 0.0
        %414 = vmatprep.subr.mxu0 0.0
        %415 = vmatpush2.msra.mxu0 0.0
        %416 = vmatprep.subr.mxu0 0.0
        %417 = vmatpush2.msra.mxu0 0.0
        %418 = vmatprep.subr.mxu0 0.0
        %419 = vmatpush2.msra.mxu0 0.0
        %420 = vmatprep.subr.mxu0 0.0
        %421 = vmatpush2.msra.mxu0 0.0
        %422 = vmatprep.subr.mxu0 0.0
        %423 = vmatpush2.msra.mxu0 0.0
        %424 = vmatprep.subr.mxu0 0.0
        %425 = vmatpush2.msra.mxu0 0.0
        %426 = vmatprep.subr.mxu0 0.0
        %427 = vmatpush2.msra.mxu0 0.0
        %428 = vmatprep.subr.mxu0 0.0
        %429 = vmatpush2.msra.mxu0 0.0
        %430 = vmatprep.subr.mxu0 0.0
        %431 = vmatpush2.msra.mxu0 0.0
        %432 = vmatprep.subr.mxu0 0.0
        %433 = vmatpush2.msra.mxu0 0.0
        %434 = vmatprep.subr.mxu0 0.0
        %435 = vmatpush2.msra.mxu0 0.0
        %436 = vmatprep.mubr.f32.mxu0 0.0
        %437 = vmatmul.mubr.f32.gmra.mxu0 %v370
        %v438 = vpop.f32.mrf.mxu0
        %v439 = vadd.f32 0.0, %v438
        %v440 = vpop.f32.mrf.mxu0
        %441 = vdwg.mxu0
        %v443 = vsel %vm222, %v217, 0
        %445 = vmatprep.subr.mxu0 0.0
        %446 = vmatpush1.msra.mxu0 0.0
        %447 = vmatprep.subr.mxu0 0.0
        %448 = vmatpush1.msra.mxu0 0.0
        %449 = vmatprep.subr.mxu0 0.0
        %450 = vmatpush1.msra.mxu0 0.0
        %451 = vmatprep.subr.mxu0 0.0
        %452 = vmatpush1.msra.mxu0 0.0
        %453 = vmatprep.subr.mxu0 0.0
        %454 = vmatpush1.msra.mxu0 0.0
        %455 = vmatprep.subr.mxu0 0.0
        %456 = vmatpush1.msra.mxu0 0.0
        %457 = vmatprep.subr.mxu0 0.0
        %458 = vmatpush1.msra.mxu0 0.0
        %459 = vmatprep.subr.mxu0 0.0
        %460 = vmatpush1.msra.mxu0 0.0
        %461 = vmatprep.subr.mxu0 0.0
        %462 = vmatpush1.msra.mxu0 0.0
        %463 = vmatprep.subr.mxu0 0.0
        %464 = vmatpush1.msra.mxu0 0.0
        %465 = vmatprep.subr.mxu0 0.0
        %466 = vmatpush1.msra.mxu0 0.0
        %467 = vmatprep.subr.mxu0 0.0
        %468 = vmatpush1.msra.mxu0 0.0
        %469 = vmatprep.subr.mxu0 0.0
        %470 = vmatpush1.msra.mxu0 0.0
        %471 = vmatprep.subr.mxu0 0.0
        %472 = vmatpush1.msra.mxu0 0.0
        %473 = vmatprep.subr.mxu0 0.0
        %474 = vmatpush1.msra.mxu0 %v221
        %475 = vmatprep.subr.mxu0 0.0
        %476 = vmatpush1.msra.mxu0 %v220
        %477 = vmatprep.subr.mxu0 0.0
        %478 = vmatpush2.msra.mxu0 0.0
        %479 = vmatprep.subr.mxu0 0.0
        %480 = vmatpush2.msra.mxu0 0.0
        %481 = vmatprep.subr.mxu0 0.0
        %482 = vmatpush2.msra.mxu0 0.0
        %483 = vmatprep.subr.mxu0 0.0
        %484 = vmatpush2.msra.mxu0 0.0
        %485 = vmatprep.subr.mxu0 0.0
        %486 = vmatpush2.msra.mxu0 0.0
        %487 = vmatprep.subr.mxu0 0.0
        %488 = vmatpush2.msra.mxu0 0.0
        %489 = vmatprep.subr.mxu0 0.0
        %490 = vmatpush2.msra.mxu0 0.0
        %491 = vmatprep.subr.mxu0 0.0
        %492 = vmatpush2.msra.mxu0 0.0
        %493 = vmatprep.subr.mxu0 0.0
        %494 = vmatpush2.msra.mxu0 0.0
        %495 = vmatprep.subr.mxu0 0.0
        %496 = vmatpush2.msra.mxu0 0.0
        %497 = vmatprep.subr.mxu0 0.0
        %498 = vmatpush2.msra.mxu0 0.0
        %499 = vmatprep.subr.mxu0 0.0
        %500 = vmatpush2.msra.mxu0 0.0
        %501 = vmatprep.subr.mxu0 0.0
        %502 = vmatpush2.msra.mxu0 0.0
        %503 = vmatprep.subr.mxu0 0.0
        %504 = vmatpush2.msra.mxu0 0.0
        %505 = vmatprep.subr.mxu0 0.0
        %506 = vmatpush2.msra.mxu0 0.0
        %507 = vmatprep.subr.mxu0 0.0
        %508 = vmatpush2.msra.mxu0 0.0
        %509 = vmatprep.mubr.f32.mxu0 0.0
        %510 = vmatmul.mubr.f32.gmra.mxu0 %v443
        %v511 = vpop.f32.mrf.mxu0
        %v512 = vadd.f32 0.0, %v511
        %v513 = vpop.f32.mrf.mxu0
        %514 = vdwg.mxu0
        %v516 = vsel %vm222, %v218, 0
        %518 = vmatprep.subr.mxu0 0.0
        %519 = vmatpush1.msra.mxu0 0.0
        %520 = vmatprep.subr.mxu0 0.0
        %521 = vmatpush1.msra.mxu0 0.0
        %522 = vmatprep.subr.mxu0 0.0
        %523 = vmatpush1.msra.mxu0 0.0
        %524 = vmatprep.subr.mxu0 0.0
        %525 = vmatpush1.msra.mxu0 0.0
        %526 = vmatprep.subr.mxu0 0.0
        %527 = vmatpush1.msra.mxu0 0.0
        %528 = vmatprep.subr.mxu0 0.0
        %529 = vmatpush1.msra.mxu0 0.0
        %530 = vmatprep.subr.mxu0 0.0
        %531 = vmatpush1.msra.mxu0 0.0
        %532 = vmatprep.subr.mxu0 0.0
        %533 = vmatpush1.msra.mxu0 0.0
        %534 = vmatprep.subr.mxu0 0.0
        %535 = vmatpush1.msra.mxu0 0.0
        %536 = vmatprep.subr.mxu0 0.0
        %537 = vmatpush1.msra.mxu0 0.0
        %538 = vmatprep.subr.mxu0 0.0
        %539 = vmatpush1.msra.mxu0 0.0
        %540 = vmatprep.subr.mxu0 0.0
        %541 = vmatpush1.msra.mxu0 0.0
        %542 = vmatprep.subr.mxu0 0.0
        %543 = vmatpush1.msra.mxu0 0.0
        %544 = vmatprep.subr.mxu0 0.0
        %545 = vmatpush1.msra.mxu0 0.0
        %546 = vmatprep.subr.mxu0 0.0
        %547 = vmatpush1.msra.mxu0 %v221
        %548 = vmatprep.subr.mxu0 0.0
        %549 = vmatpush1.msra.mxu0 %v220
        %550 = vmatprep.subr.mxu0 0.0
        %551 = vmatpush2.msra.mxu0 0.0
        %552 = vmatprep.subr.mxu0 0.0
        %553 = vmatpush2.msra.mxu0 0.0
        %554 = vmatprep.subr.mxu0 0.0
        %555 = vmatpush2.msra.mxu0 0.0
        %556 = vmatprep.subr.mxu0 0.0
        %557 = vmatpush2.msra.mxu0 0.0
        %558 = vmatprep.subr.mxu0 0.0
        %559 = vmatpush2.msra.mxu0 0.0
        %560 = vmatprep.subr.mxu0 0.0
        %561 = vmatpush2.msra.mxu0 0.0
        %562 = vmatprep.subr.mxu0 0.0
        %563 = vmatpush2.msra.mxu0 0.0
        %564 = vmatprep.subr.mxu0 0.0
        %565 = vmatpush2.msra.mxu0 0.0
        %566 = vmatprep.subr.mxu0 0.0
        %567 = vmatpush2.msra.mxu0 0.0
        %568 = vmatprep.subr.mxu0 0.0
        %569 = vmatpush2.msra.mxu0 0.0
        %570 = vmatprep.subr.mxu0 0.0
        %571 = vmatpush2.msra.mxu0 0.0
        %572 = vmatprep.subr.mxu0 0.0
        %573 = vmatpush2.msra.mxu0 0.0
        %574 = vmatprep.subr.mxu0 0.0
        %575 = vmatpush2.msra.mxu0 0.0
        %576 = vmatprep.subr.mxu0 0.0
        %577 = vmatpush2.msra.mxu0 0.0
        %578 = vmatprep.subr.mxu0 0.0
        %579 = vmatpush2.msra.mxu0 0.0
        %580 = vmatprep.subr.mxu0 0.0
        %581 = vmatpush2.msra.mxu0 0.0
        %582 = vmatprep.mubr.f32.mxu0 0.0
        %583 = vmatmul.mubr.f32.gmra.mxu0 %v516
        %v584 = vpop.f32.mrf.mxu0
        %v585 = vadd.f32 0.0, %v584
        %v586 = vpop.f32.mrf.mxu0
        %587 = vdwg.mxu0
        %v589 = vsel %vm222, %v219, 0
        %591 = vmatprep.subr.mxu0 0.0
        %592 = vmatpush1.msra.mxu0 0.0
        %593 = vmatprep.subr.mxu0 0.0
        %594 = vmatpush1.msra.mxu0 0.0
        %595 = vmatprep.subr.mxu0 0.0
        %596 = vmatpush1.msra.mxu0 0.0
        %597 = vmatprep.subr.mxu0 0.0
        %598 = vmatpush1.msra.mxu0 0.0
        %599 = vmatprep.subr.mxu0 0.0
        %600 = vmatpush1.msra.mxu0 0.0
        %601 = vmatprep.subr.mxu0 0.0
        %602 = vmatpush1.msra.mxu0 0.0
        %603 = vmatprep.subr.mxu0 0.0
        %604 = vmatpush1.msra.mxu0 0.0
        %605 = vmatprep.subr.mxu0 0.0
        %606 = vmatpush1.msra.mxu0 0.0
        %607 = vmatprep.subr.mxu0 0.0
        %608 = vmatpush1.msra.mxu0 0.0
        %609 = vmatprep.subr.mxu0 0.0
        %610 = vmatpush1.msra.mxu0 0.0
        %611 = vmatprep.subr.mxu0 0.0
        %612 = vmatpush1.msra.mxu0 0.0
        %613 = vmatprep.subr.mxu0 0.0
        %614 = vmatpush1.msra.mxu0 0.0
        %615 = vmatprep.subr.mxu0 0.0
        %616 = vmatpush1.msra.mxu0 0.0
        %617 = vmatprep.subr.mxu0 0.0
        %618 = vmatpush1.msra.mxu0 0.0
        %619 = vmatprep.subr.mxu0 0.0
        %620 = vmatpush1.msra.mxu0 %v221
        %621 = vmatprep.subr.mxu0 0.0
        %622 = vmatpush1.msra.mxu0 %v220
        %623 = vmatprep.subr.mxu0 0.0
        %624 = vmatpush2.msra.mxu0 0.0
        %625 = vmatprep.subr.mxu0 0.0
        %626 = vmatpush2.msra.mxu0 0.0
        %627 = vmatprep.subr.mxu0 0.0
        %628 = vmatpush2.msra.mxu0 0.0
        %629 = vmatprep.subr.mxu0 0.0
        %630 = vmatpush2.msra.mxu0 0.0
        %631 = vmatprep.subr.mxu0 0.0
        %632 = vmatpush2.msra.mxu0 0.0
        %633 = vmatprep.subr.mxu0 0.0
        %634 = vmatpush2.msra.mxu0 0.0
        %635 = vmatprep.subr.mxu0 0.0
        %636 = vmatpush2.msra.mxu0 0.0
        %637 = vmatprep.subr.mxu0 0.0
        %638 = vmatpush2.msra.mxu0 0.0
        %639 = vmatprep.subr.mxu0 0.0
        %640 = vmatpush2.msra.mxu0 0.0
        %641 = vmatprep.subr.mxu0 0.0
        %642 = vmatpush2.msra.mxu0 0.0
        %643 = vmatprep.subr.mxu0 0.0
        %644 = vmatpush2.msra.mxu0 0.0
        %645 = vmatprep.subr.mxu0 0.0
        %646 = vmatpush2.msra.mxu0 0.0
        %647 = vmatprep.subr.mxu0 0.0
        %648 = vmatpush2.msra.mxu0 0.0
        %649 = vmatprep.subr.mxu0 0.0
        %650 = vmatpush2.msra.mxu0 0.0
        %651 = vmatprep.subr.mxu0 0.0
        %652 = vmatpush2.msra.mxu0 0.0
        %653 = vmatprep.subr.mxu0 0.0
        %654 = vmatpush2.msra.mxu0 0.0
        %655 = vmatprep.mubr.f32.mxu0 0.0
        %656 = vmatmul.mubr.f32.gmra.mxu0 %v589
        %v657 = vpop.f32.mrf.mxu0
        %v658 = vadd.f32 0.0, %v657
        %v659 = vpop.f32.mrf.mxu0
        %660 = vdwg.mxu0
        %vm661 = vcmask 277504
        %662 = vst.msk [vmem:[#allocation2] sm:$0xff] %vm661, %v293
        %s663 = scalar_lea.vmem [#allocation2], 8
        %664 = vst.msk [vmem:[%s663] sm:$0xff] %vm661, %v366
        %s665 = scalar_lea.vmem [#allocation2], 16
        %666 = vst.msk [vmem:[%s665] sm:$0xff] %vm661, %v366
        %s667 = scalar_lea.vmem [#allocation2], 24
        %668 = vst.msk [vmem:[%s667] sm:$0xff] %vm661, %v439
        %s669 = scalar_lea.vmem [#allocation2], 32
        %670 = vst.msk [vmem:[%s669] sm:$0xff] %vm661, %v439
        %s671 = scalar_lea.vmem [#allocation2], 40
        %672 = vst.msk [vmem:[%s671] sm:$0xff] %vm661, %v512
        %s673 = scalar_lea.vmem [#allocation2], 48
        %674 = vst.msk [vmem:[%s673] sm:$0xff] %vm661, %v512
        %s675 = scalar_lea.vmem [#allocation2], 56
        %676 = vst.msk [vmem:[%s675] sm:$0xff] %vm661, %v585
        %s677 = scalar_lea.vmem [#allocation2], 64
        %678 = vst.msk [vmem:[%s677] sm:$0xff] %vm661, %v585
        %s679 = scalar_lea.vmem [#allocation2], 72
        %680 = vst.msk [vmem:[%s679] sm:$0xff] %vm661, %v658
        %v681 = vld [vmem:[#allocation2] sm:$0xff]
        %v682 = vld [vmem:[#allocation2 + $0x8] sm:$0xff]
        %v683 = vld [vmem:[#allocation2 + $0x10] sm:$0xff]
        %v684 = vld [vmem:[#allocation2 + $0x18] sm:$0xff]
        %v685 = vld [vmem:[#allocation2 + $0x20] sm:$0xff]
        %v686 = vld [vmem:[#allocation2 + $0x28] sm:$0xff]
        %v687 = vld [vmem:[#allocation2 + $0x30] sm:$0xff]
        %v688 = vld [vmem:[#allocation2 + $0x38] sm:$0xff]
        %vm689 = vcmask 261120
        %690 = vst.msk [vmem:[#allocation3] sm:$0xff] %vm689, %v681
        %691 = vst.msk [vmem:[#allocation3 + $0x48] sm:$0xff] %vm689, %v682
        %692 = vst.msk [vmem:[#allocation3 + $0x90] sm:$0xff] %vm689, %v683
        %693 = vst.msk [vmem:[#allocation3 + $0xd8] sm:$0xff] %vm689, %v684
        %694 = vst.msk [vmem:[#allocation3 + $0x120] sm:$0xff] %vm689, %v685
        %695 = vst.msk [vmem:[#allocation3 + $0x168] sm:$0xff] %vm689, %v686
        %696 = vst.msk [vmem:[#allocation3 + $0x1b0] sm:$0xff] %vm689, %v687
        %697 = vst.msk [vmem:[#allocation3 + $0x1f8] sm:$0xff] %vm689, %v688
        %v698 = vld [vmem:[#allocation2] sm:$0xff]
        %v699 = vld [vmem:[#allocation2 + $0x8] sm:$0xff]
        %v700 = vld [vmem:[#allocation2 + $0x10] sm:$0xff]
        %v701 = vld [vmem:[#allocation2 + $0x18] sm:$0xff]
        %v702 = vld [vmem:[#allocation2 + $0x20] sm:$0xff]
        %v703 = vld [vmem:[#allocation2 + $0x28] sm:$0xff]
        %v704 = vld [vmem:[#allocation2 + $0x30] sm:$0xff]
        %v705 = vld [vmem:[#allocation2 + $0x38] sm:$0xff]
        %714 = vrot.lane.b32.xlu0 %v698, 127
        %v715 = vpop.permute.xlu0 %714
        %716 = vrot.lane.b32.xlu0 %v699, 127
        %v717 = vpop.permute.xlu0 %716
        %718 = vrot.lane.b32.xlu0 %v700, 127
        %v719 = vpop.permute.xlu0 %718
        %720 = vrot.lane.b32.xlu0 %v701, 127
        %v721 = vpop.permute.xlu0 %720
        %722 = vrot.lane.b32.xlu0 %v702, 127
        %v723 = vpop.permute.xlu0 %722
        %724 = vrot.lane.b32.xlu0 %v703, 127
        %v725 = vpop.permute.xlu0 %724
        %726 = vrot.lane.b32.xlu0 %v704, 127
        %v727 = vpop.permute.xlu0 %726
        %728 = vrot.lane.b32.xlu0 %v705, 127
        %v729 = vpop.permute.xlu0 %728
        %738 = vst.msk [vmem:[#allocation3 + $0x8] sm:$0xff] %vm689, %v715
        %739 = vst.msk [vmem:[#allocation3 + $0x50] sm:$0xff] %vm689, %v717
        %740 = vst.msk [vmem:[#allocation3 + $0x98] sm:$0xff] %vm689, %v719
        %741 = vst.msk [vmem:[#allocation3 + $0xe0] sm:$0xff] %vm689, %v721
        %742 = vst.msk [vmem:[#allocation3 + $0x128] sm:$0xff] %vm689, %v723
        %743 = vst.msk [vmem:[#allocation3 + $0x170] sm:$0xff] %vm689, %v725
        %744 = vst.msk [vmem:[#allocation3 + $0x1b8] sm:$0xff] %vm689, %v727
        %745 = vst.msk [vmem:[#allocation3 + $0x200] sm:$0xff] %vm689, %v729
        %v746 = vld [vmem:[#allocation2] sm:$0xff]
        %v747 = vld [vmem:[#allocation2 + $0x8] sm:$0xff]
        %v748 = vld [vmem:[#allocation2 + $0x10] sm:$0xff]
        %v749 = vld [vmem:[#allocation2 + $0x18] sm:$0xff]
        %v750 = vld [vmem:[#allocation2 + $0x20] sm:$0xff]
        %v751 = vld [vmem:[#allocation2 + $0x28] sm:$0xff]
        %v752 = vld [vmem:[#allocation2 + $0x30] sm:$0xff]
        %v753 = vld [vmem:[#allocation2 + $0x38] sm:$0xff]
        %762 = vrot.lane.b32.xlu0 %v746, 126
        %v763 = vpop.permute.xlu0 %762
        %764 = vrot.lane.b32.xlu0 %v747, 126
        %v765 = vpop.permute.xlu0 %764
        %766 = vrot.lane.b32.xlu0 %v748, 126
        %v767 = vpop.permute.xlu0 %766
        %768 = vrot.lane.b32.xlu0 %v749, 126
        %v769 = vpop.permute.xlu0 %768
        %770 = vrot.lane.b32.xlu0 %v750, 126
        %v771 = vpop.permute.xlu0 %770
        %772 = vrot.lane.b32.xlu0 %v751, 126
        %v773 = vpop.permute.xlu0 %772
        %774 = vrot.lane.b32.xlu0 %v752, 126
        %v775 = vpop.permute.xlu0 %774
        %776 = vrot.lane.b32.xlu0 %v753, 126
        %v777 = vpop.permute.xlu0 %776
        %786 = vst.msk [vmem:[#allocation3 + $0x10] sm:$0xff] %vm689, %v763
        %787 = vst.msk [vmem:[#allocation3 + $0x58] sm:$0xff] %vm689, %v765
        %788 = vst.msk [vmem:[#allocation3 + $0xa0] sm:$0xff] %vm689, %v767
        %789 = vst.msk [vmem:[#allocation3 + $0xe8] sm:$0xff] %vm689, %v769
        %790 = vst.msk [vmem:[#allocation3 + $0x130] sm:$0xff] %vm689, %v771
        %791 = vst.msk [vmem:[#allocation3 + $0x178] sm:$0xff] %vm689, %v773
        %792 = vst.msk [vmem:[#allocation3 + $0x1c0] sm:$0xff] %vm689, %v775
        %793 = vst.msk [vmem:[#allocation3 + $0x208] sm:$0xff] %vm689, %v777
        %v794 = vld [vmem:[%s663] sm:$0xff]
        %v795 = vld [vmem:[%s663 + $0x8] sm:$0xff]
        %v796 = vld [vmem:[%s663 + $0x10] sm:$0xff]
        %v797 = vld [vmem:[%s663 + $0x18] sm:$0xff]
        %v798 = vld [vmem:[%s663 + $0x20] sm:$0xff]
        %v799 = vld [vmem:[%s663 + $0x28] sm:$0xff]
        %v800 = vld [vmem:[%s663 + $0x30] sm:$0xff]
        %v801 = vld [vmem:[%s663 + $0x38] sm:$0xff]
        %802 = vst.msk [vmem:[#allocation3 + $0x18] sm:$0xff] %vm689, %v794
        %803 = vst.msk [vmem:[#allocation3 + $0x60] sm:$0xff] %vm689, %v795
        %804 = vst.msk [vmem:[#allocation3 + $0xa8] sm:$0xff] %vm689, %v796
        %805 = vst.msk [vmem:[#allocation3 + $0xf0] sm:$0xff] %vm689, %v797
        %806 = vst.msk [vmem:[#allocation3 + $0x138] sm:$0xff] %vm689, %v798
        %807 = vst.msk [vmem:[#allocation3 + $0x180] sm:$0xff] %vm689, %v799
        %808 = vst.msk [vmem:[#allocation3 + $0x1c8] sm:$0xff] %vm689, %v800
        %809 = vst.msk [vmem:[#allocation3 + $0x210] sm:$0xff] %vm689, %v801
        %v810 = vld [vmem:[%s663] sm:$0xff]
        %v811 = vld [vmem:[%s663 + $0x8] sm:$0xff]
        %v812 = vld [vmem:[%s663 + $0x10] sm:$0xff]
        %v813 = vld [vmem:[%s663 + $0x18] sm:$0xff]
        %v814 = vld [vmem:[%s663 + $0x20] sm:$0xff]
        %v815 = vld [vmem:[%s663 + $0x28] sm:$0xff]
        %v816 = vld [vmem:[%s663 + $0x30] sm:$0xff]
        %v817 = vld [vmem:[%s663 + $0x38] sm:$0xff]
        %826 = vrot.lane.b32.xlu0 %v810, 127
        %v827 = vpop.permute.xlu0 %826
        %828 = vrot.lane.b32.xlu0 %v811, 127
        %v829 = vpop.permute.xlu0 %828
        %830 = vrot.lane.b32.xlu0 %v812, 127
        %v831 = vpop.permute.xlu0 %830
        %832 = vrot.lane.b32.xlu0 %v813, 127
        %v833 = vpop.permute.xlu0 %832
        %834 = vrot.lane.b32.xlu0 %v814, 127
        %v835 = vpop.permute.xlu0 %834
        %836 = vrot.lane.b32.xlu0 %v815, 127
        %v837 = vpop.permute.xlu0 %836
        %838 = vrot.lane.b32.xlu0 %v816, 127
        %v839 = vpop.permute.xlu0 %838
        %840 = vrot.lane.b32.xlu0 %v817, 127
        %v841 = vpop.permute.xlu0 %840
        %850 = vst.msk [vmem:[#allocation3 + $0x20] sm:$0xff] %vm689, %v827
        %851 = vst.msk [vmem:[#allocation3 + $0x68] sm:$0xff] %vm689, %v829
        %852 = vst.msk [vmem:[#allocation3 + $0xb0] sm:$0xff] %vm689, %v831
        %853 = vst.msk [vmem:[#allocation3 + $0xf8] sm:$0xff] %vm689, %v833
        %854 = vst.msk [vmem:[#allocation3 + $0x140] sm:$0xff] %vm689, %v835
        %855 = vst.msk [vmem:[#allocation3 + $0x188] sm:$0xff] %vm689, %v837
        %856 = vst.msk [vmem:[#allocation3 + $0x1d0] sm:$0xff] %vm689, %v839
        %857 = vst.msk [vmem:[#allocation3 + $0x218] sm:$0xff] %vm689, %v841
        %v858 = vld [vmem:[%s663] sm:$0xff]
        %v859 = vld [vmem:[%s663 + $0x8] sm:$0xff]
        %v860 = vld [vmem:[%s663 + $0x10] sm:$0xff]
        %v861 = vld [vmem:[%s663 + $0x18] sm:$0xff]
        %v862 = vld [vmem:[%s663 + $0x20] sm:$0xff]
        %v863 = vld [vmem:[%s663 + $0x28] sm:$0xff]
        %v864 = vld [vmem:[%s663 + $0x30] sm:$0xff]
        %v865 = vld [vmem:[%s663 + $0x38] sm:$0xff]
        %874 = vrot.lane.b32.xlu0 %v858, 126
        %v875 = vpop.permute.xlu0 %874
        %876 = vrot.lane.b32.xlu0 %v859, 126
        %v877 = vpop.permute.xlu0 %876
        %878 = vrot.lane.b32.xlu0 %v860, 126
        %v879 = vpop.permute.xlu0 %878
        %880 = vrot.lane.b32.xlu0 %v861, 126
        %v881 = vpop.permute.xlu0 %880
        %882 = vrot.lane.b32.xlu0 %v862, 126
        %v883 = vpop.permute.xlu0 %882
        %884 = vrot.lane.b32.xlu0 %v863, 126
        %v885 = vpop.permute.xlu0 %884
        %886 = vrot.lane.b32.xlu0 %v864, 126
        %v887 = vpop.permute.xlu0 %886
        %888 = vrot.lane.b32.xlu0 %v865, 126
        %v889 = vpop.permute.xlu0 %888
        %898 = vst.msk [vmem:[#allocation3 + $0x28] sm:$0xff] %vm689, %v875
        %899 = vst.msk [vmem:[#allocation3 + $0x70] sm:$0xff] %vm689, %v877
        %900 = vst.msk [vmem:[#allocation3 + $0xb8] sm:$0xff] %vm689, %v879
        %901 = vst.msk [vmem:[#allocation3 + $0x100] sm:$0xff] %vm689, %v881
        %902 = vst.msk [vmem:[#allocation3 + $0x148] sm:$0xff] %vm689, %v883
        %903 = vst.msk [vmem:[#allocation3 + $0x190] sm:$0xff] %vm689, %v885
        %904 = vst.msk [vmem:[#allocation3 + $0x1d8] sm:$0xff] %vm689, %v887
        %905 = vst.msk [vmem:[#allocation3 + $0x220] sm:$0xff] %vm689, %v889
        %v906 = vld [vmem:[%s665] sm:$0xff]
        %v907 = vld [vmem:[%s665 + $0x8] sm:$0xff]
        %v908 = vld [vmem:[%s665 + $0x10] sm:$0xff]
        %v909 = vld [vmem:[%s665 + $0x18] sm:$0xff]
        %v910 = vld [vmem:[%s665 + $0x20] sm:$0xff]
        %v911 = vld [vmem:[%s665 + $0x28] sm:$0xff]
        %v912 = vld [vmem:[%s665 + $0x30] sm:$0xff]
        %v913 = vld [vmem:[%s665 + $0x38] sm:$0xff]
        %914 = vst.msk [vmem:[#allocation3 + $0x30] sm:$0xff] %vm689, %v906
        %915 = vst.msk [vmem:[#allocation3 + $0x78] sm:$0xff] %vm689, %v907
        %916 = vst.msk [vmem:[#allocation3 + $0xc0] sm:$0xff] %vm689, %v908
        %917 = vst.msk [vmem:[#allocation3 + $0x108] sm:$0xff] %vm689, %v909
        %918 = vst.msk [vmem:[#allocation3 + $0x150] sm:$0xff] %vm689, %v910
        %919 = vst.msk [vmem:[#allocation3 + $0x198] sm:$0xff] %vm689, %v911
        %920 = vst.msk [vmem:[#allocation3 + $0x1e0] sm:$0xff] %vm689, %v912
        %921 = vst.msk [vmem:[#allocation3 + $0x228] sm:$0xff] %vm689, %v913
        %v922 = vld [vmem:[%s665] sm:$0xff]
        %v923 = vld [vmem:[%s665 + $0x8] sm:$0xff]
        %v924 = vld [vmem:[%s665 + $0x10] sm:$0xff]
        %v925 = vld [vmem:[%s665 + $0x18] sm:$0xff]
        %v926 = vld [vmem:[%s665 + $0x20] sm:$0xff]
        %v927 = vld [vmem:[%s665 + $0x28] sm:$0xff]
        %v928 = vld [vmem:[%s665 + $0x30] sm:$0xff]
        %v929 = vld [vmem:[%s665 + $0x38] sm:$0xff]
        %938 = vrot.lane.b32.xlu0 %v922, 127
        %v939 = vpop.permute.xlu0 %938
        %940 = vrot.lane.b32.xlu0 %v923, 127
        %v941 = vpop.permute.xlu0 %940
        %942 = vrot.lane.b32.xlu0 %v924, 127
        %v943 = vpop.permute.xlu0 %942
        %944 = vrot.lane.b32.xlu0 %v925, 127
        %v945 = vpop.permute.xlu0 %944
        %946 = vrot.lane.b32.xlu0 %v926, 127
        %v947 = vpop.permute.xlu0 %946
        %948 = vrot.lane.b32.xlu0 %v927, 127
        %v949 = vpop.permute.xlu0 %948
        %950 = vrot.lane.b32.xlu0 %v928, 127
        %v951 = vpop.permute.xlu0 %950
        %952 = vrot.lane.b32.xlu0 %v929, 127
        %v953 = vpop.permute.xlu0 %952
        %962 = vst.msk [vmem:[#allocation3 + $0x38] sm:$0xff] %vm689, %v939
        %963 = vst.msk [vmem:[#allocation3 + $0x80] sm:$0xff] %vm689, %v941
        %964 = vst.msk [vmem:[#allocation3 + $0xc8] sm:$0xff] %vm689, %v943
        %965 = vst.msk [vmem:[#allocation3 + $0x110] sm:$0xff] %vm689, %v945
        %966 = vst.msk [vmem:[#allocation3 + $0x158] sm:$0xff] %vm689, %v947
        %967 = vst.msk [vmem:[#allocation3 + $0x1a0] sm:$0xff] %vm689, %v949
        %968 = vst.msk [vmem:[#allocation3 + $0x1e8] sm:$0xff] %vm689, %v951
        %969 = vst.msk [vmem:[#allocation3 + $0x230] sm:$0xff] %vm689, %v953
        %v970 = vld [vmem:[%s665] sm:$0xff]
        %v971 = vld [vmem:[%s665 + $0x8] sm:$0xff]
        %v972 = vld [vmem:[%s665 + $0x10] sm:$0xff]
        %v973 = vld [vmem:[%s665 + $0x18] sm:$0xff]
        %v974 = vld [vmem:[%s665 + $0x20] sm:$0xff]
        %v975 = vld [vmem:[%s665 + $0x28] sm:$0xff]
        %v976 = vld [vmem:[%s665 + $0x30] sm:$0xff]
        %v977 = vld [vmem:[%s665 + $0x38] sm:$0xff]
        %986 = vrot.lane.b32.xlu0 %v970, 126
        %v987 = vpop.permute.xlu0 %986
        %988 = vrot.lane.b32.xlu0 %v971, 126
        %v989 = vpop.permute.xlu0 %988
        %990 = vrot.lane.b32.xlu0 %v972, 126
        %v991 = vpop.permute.xlu0 %990
        %992 = vrot.lane.b32.xlu0 %v973, 126
        %v993 = vpop.permute.xlu0 %992
        %994 = vrot.lane.b32.xlu0 %v974, 126
        %v995 = vpop.permute.xlu0 %994
        %996 = vrot.lane.b32.xlu0 %v975, 126
        %v997 = vpop.permute.xlu0 %996
        %998 = vrot.lane.b32.xlu0 %v976, 126
        %v999 = vpop.permute.xlu0 %998
        %1000 = vrot.lane.b32.xlu0 %v977, 126
        %v1001 = vpop.permute.xlu0 %1000
        %1010 = vst.msk [vmem:[#allocation3 + $0x40] sm:$0xff] %vm689, %v987
        %1011 = vst.msk [vmem:[#allocation3 + $0x88] sm:$0xff] %vm689, %v989
        %1012 = vst.msk [vmem:[#allocation3 + $0xd0] sm:$0xff] %vm689, %v991
        %1013 = vst.msk [vmem:[#allocation3 + $0x118] sm:$0xff] %vm689, %v993
        %1014 = vst.msk [vmem:[#allocation3 + $0x160] sm:$0xff] %vm689, %v995
        %1015 = vst.msk [vmem:[#allocation3 + $0x1a8] sm:$0xff] %vm689, %v997
        %1016 = vst.msk [vmem:[#allocation3 + $0x1f0] sm:$0xff] %vm689, %v999
        %1017 = vst.msk [vmem:[#allocation3 + $0x238] sm:$0xff] %vm689, %v1001
        %v1018 = vld [vmem:[%s1] sm:$0xf]
        %v1019 = vld [vmem:[#allocation3] sm:$0xff]
        %v1020 = vld [vmem:[#allocation3 + $0x8] sm:$0xff]
        %v1021 = vld [vmem:[#allocation3 + $0x10] sm:$0xff]
        %v1022 = vld [vmem:[#allocation3 + $0x18] sm:$0xff]
        %v1023 = vld [vmem:[#allocation3 + $0x20] sm:$0xff]
        %v1024 = vld [vmem:[#allocation3 + $0x28] sm:$0xff]
        %v1025 = vld [vmem:[#allocation3 + $0x30] sm:$0xff]
        %v1026 = vld [vmem:[#allocation3 + $0x38] sm:$0xff]
        %v1027 = vld [vmem:[#allocation3 + $0x40] sm:$0xff]
        %v1028 = vld [vmem:[#allocation3 + $0x48] sm:$0xff]
        %v1029 = vld [vmem:[#allocation3 + $0x50] sm:$0xff]
        %v1030 = vld [vmem:[#allocation3 + $0x58] sm:$0xff]
        %v1031 = vld [vmem:[#allocation3 + $0x60] sm:$0xff]
        %v1032 = vld [vmem:[#allocation3 + $0x68] sm:$0xff]
        %v1033 = vld [vmem:[#allocation3 + $0x70] sm:$0xff]
        %v1034 = vld [vmem:[#allocation3 + $0x78] sm:$0xff]
        %v1035 = vld [vmem:[#allocation3 + $0x80] sm:$0xff]
        %v1036 = vld [vmem:[#allocation3 + $0x88] sm:$0xff]
        %v1037 = vld [vmem:[#allocation3 + $0x90] sm:$0xff]
        %v1038 = vld [vmem:[#allocation3 + $0x98] sm:$0xff]
        %v1039 = vld [vmem:[#allocation3 + $0xa0] sm:$0xff]
        %v1040 = vld [vmem:[#allocation3 + $0xa8] sm:$0xff]
        %v1041 = vld [vmem:[#allocation3 + $0xb0] sm:$0xff]
        %v1042 = vld [vmem:[#allocation3 + $0xb8] sm:$0xff]
        %v1043 = vld [vmem:[#allocation3 + $0xc0] sm:$0xff]
        %v1044 = vld [vmem:[#allocation3 + $0xc8] sm:$0xff]
        %v1045 = vld [vmem:[#allocation3 + $0xd0] sm:$0xff]
        %v1046 = vld [vmem:[#allocation3 + $0xd8] sm:$0xff]
        %v1047 = vld [vmem:[#allocation3 + $0xe0] sm:$0xff]
        %v1048 = vld [vmem:[#allocation3 + $0xe8] sm:$0xff]
        %v1049 = vld [vmem:[#allocation3 + $0xf0] sm:$0xff]
        %v1050 = vld [vmem:[#allocation3 + $0xf8] sm:$0xff]
        %v1051 = vld [vmem:[#allocation3 + $0x100] sm:$0xff]
        %v1052 = vld [vmem:[#allocation3 + $0x108] sm:$0xff]
        %v1053 = vld [vmem:[#allocation3 + $0x110] sm:$0xff]
        %v1054 = vld [vmem:[#allocation3 + $0x118] sm:$0xff]
        %v1055 = vld [vmem:[#allocation3 + $0x120] sm:$0xff]
        %v1056 = vld [vmem:[#allocation3 + $0x128] sm:$0xff]
        %v1057 = vld [vmem:[#allocation3 + $0x130] sm:$0xff]
        %v1058 = vld [vmem:[#allocation3 + $0x138] sm:$0xff]
        %v1059 = vld [vmem:[#allocation3 + $0x140] sm:$0xff]
        %v1060 = vld [vmem:[#allocation3 + $0x148] sm:$0xff]
        %v1061 = vld [vmem:[#allocation3 + $0x150] sm:$0xff]
        %v1062 = vld [vmem:[#allocation3 + $0x158] sm:$0xff]
        %v1063 = vld [vmem:[#allocation3 + $0x160] sm:$0xff]
        %v1064 = vld [vmem:[#allocation3 + $0x168] sm:$0xff]
        %v1065 = vld [vmem:[#allocation3 + $0x170] sm:$0xff]
        %v1066 = vld [vmem:[#allocation3 + $0x178] sm:$0xff]
        %v1067 = vld [vmem:[#allocation3 + $0x180] sm:$0xff]
        %v1068 = vld [vmem:[#allocation3 + $0x188] sm:$0xff]
        %v1069 = vld [vmem:[#allocation3 + $0x190] sm:$0xff]
        %v1070 = vld [vmem:[#allocation3 + $0x198] sm:$0xff]
        %v1071 = vld [vmem:[#allocation3 + $0x1a0] sm:$0xff]
        %v1072 = vld [vmem:[#allocation3 + $0x1a8] sm:$0xff]
        %v1073 = vld [vmem:[#allocation3 + $0x1b0] sm:$0xff]
        %v1074 = vld [vmem:[#allocation3 + $0x1b8] sm:$0xff]
        %v1075 = vld [vmem:[#allocation3 + $0x1c0] sm:$0xff]
        %v1076 = vld [vmem:[#allocation3 + $0x1c8] sm:$0xff]
        %v1077 = vld [vmem:[#allocation3 + $0x1d0] sm:$0xff]
        %v1078 = vld [vmem:[#allocation3 + $0x1d8] sm:$0xff]
        %v1079 = vld [vmem:[#allocation3 + $0x1e0] sm:$0xff]
        %v1080 = vld [vmem:[#allocation3 + $0x1e8] sm:$0xff]
        %v1081 = vld [vmem:[#allocation3 + $0x1f0] sm:$0xff]
        %v1082 = vld [vmem:[#allocation3 + $0x1f8] sm:$0xff]
        %v1083 = vld [vmem:[#allocation3 + $0x200] sm:$0xff]
        %v1084 = vld [vmem:[#allocation3 + $0x208] sm:$0xff]
        %v1085 = vld [vmem:[#allocation3 + $0x210] sm:$0xff]
        %v1086 = vld [vmem:[#allocation3 + $0x218] sm:$0xff]
        %v1087 = vld [vmem:[#allocation3 + $0x220] sm:$0xff]
        %v1088 = vld [vmem:[#allocation3 + $0x228] sm:$0xff]
        %v1089 = vld [vmem:[#allocation3 + $0x230] sm:$0xff]
        %v1090 = vld [vmem:[#allocation3 + $0x238] sm:$0xff]
        %v1091 = vld [vmem:[%s2] sm:$0xf]
        %1093 = vset.pattern.permute.xlu0 0
        %1094 = vperm.xlu0 %1093, %v1091
        %v1095 = vpop.permute.xlu0 %1094
        %vm1097 = vcmask 588800
        %v1099 = vsel %vm1097, %v1018, 0
        %1101 = vmatprep.subr.mxu0 0.0
        %1102 = vmatpush1.msra.mxu0 0.0
        %1103 = vmatprep.subr.mxu0 0.0
        %1104 = vmatpush1.msra.mxu0 0.0
        %1105 = vmatprep.subr.mxu0 0.0
        %1106 = vmatpush1.msra.mxu0 0.0
        %1107 = vmatprep.subr.mxu0 0.0
        %1108 = vmatpush1.msra.mxu0 0.0
        %1109 = vmatprep.subr.mxu0 0.0
        %1110 = vmatpush1.msra.mxu0 0.0
        %1111 = vmatprep.subr.mxu0 0.0
        %1112 = vmatpush1.msra.mxu0 0.0
        %1113 = vmatprep.subr.mxu0 0.0
        %1114 = vmatpush1.msra.mxu0 0.0
        %1115 = vmatprep.subr.mxu0 0.0
        %1116 = vmatpush1.msra.mxu0 %v1027
        %1117 = vmatprep.subr.mxu0 0.0
        %1118 = vmatpush1.msra.mxu0 %v1026
        %1119 = vmatprep.subr.mxu0 0.0
        %1120 = vmatpush1.msra.mxu0 %v1025
        %1121 = vmatprep.subr.mxu0 0.0
        %1122 = vmatpush1.msra.mxu0 %v1024
        %1123 = vmatprep.subr.mxu0 0.0
        %1124 = vmatpush1.msra.mxu0 %v1023
        %1125 = vmatprep.subr.mxu0 0.0
        %1126 = vmatpush1.msra.mxu0 %v1022
        %1127 = vmatprep.subr.mxu0 0.0
        %1128 = vmatpush1.msra.mxu0 %v1021
        %1129 = vmatprep.subr.mxu0 0.0
        %1130 = vmatpush1.msra.mxu0 %v1020
        %1131 = vmatprep.subr.mxu0 0.0
        %1132 = vmatpush1.msra.mxu0 %v1019
        %1133 = vmatprep.subr.mxu0 0.0
        %1134 = vmatpush2.msra.mxu0 0.0
        %1135 = vmatprep.subr.mxu0 0.0
        %1136 = vmatpush2.msra.mxu0 0.0
        %1137 = vmatprep.subr.mxu0 0.0
        %1138 = vmatpush2.msra.mxu0 0.0
        %1139 = vmatprep.subr.mxu0 0.0
        %1140 = vmatpush2.msra.mxu0 0.0
        %1141 = vmatprep.subr.mxu0 0.0
        %1142 = vmatpush2.msra.mxu0 0.0
        %1143 = vmatprep.subr.mxu0 0.0
        %1144 = vmatpush2.msra.mxu0 0.0
        %1145 = vmatprep.subr.mxu0 0.0
        %1146 = vmatpush2.msra.mxu0 0.0
        %1147 = vmatprep.subr.mxu0 0.0
        %1148 = vmatpush2.msra.mxu0 0.0
        %1149 = vmatprep.subr.mxu0 0.0
        %1150 = vmatpush2.msra.mxu0 0.0
        %1151 = vmatprep.subr.mxu0 0.0
        %1152 = vmatpush2.msra.mxu0 0.0
        %1153 = vmatprep.subr.mxu0 0.0
        %1154 = vmatpush2.msra.mxu0 0.0
        %1155 = vmatprep.subr.mxu0 0.0
        %1156 = vmatpush2.msra.mxu0 0.0
        %1157 = vmatprep.subr.mxu0 0.0
        %1158 = vmatpush2.msra.mxu0 0.0
        %1159 = vmatprep.subr.mxu0 0.0
        %1160 = vmatpush2.msra.mxu0 0.0
        %1161 = vmatprep.subr.mxu0 0.0
        %1162 = vmatpush2.msra.mxu0 0.0
        %1163 = vmatprep.subr.mxu0 0.0
        %1164 = vmatpush2.msra.mxu0 0.0
        %1165 = vmatprep.mubr.f32.mxu0 0.0
        %1166 = vmatmul.mubr.f32.gmra.mxu0 %v1099
        %v1167 = vpop.f32.mrf.mxu0
        %v1168 = vadd.f32 %v1095, %v1167
        %v1169 = vpop.f32.mrf.mxu0
        %1170 = vdwg.mxu0
        %1171 = vmatprep.subr.mxu0 0.0
        %1172 = vmatpush1.msra.mxu0 0.0
        %1173 = vmatprep.subr.mxu0 0.0
        %1174 = vmatpush1.msra.mxu0 0.0
        %1175 = vmatprep.subr.mxu0 0.0
        %1176 = vmatpush1.msra.mxu0 0.0
        %1177 = vmatprep.subr.mxu0 0.0
        %1178 = vmatpush1.msra.mxu0 0.0
        %1179 = vmatprep.subr.mxu0 0.0
        %1180 = vmatpush1.msra.mxu0 0.0
        %1181 = vmatprep.subr.mxu0 0.0
        %1182 = vmatpush1.msra.mxu0 0.0
        %1183 = vmatprep.subr.mxu0 0.0
        %1184 = vmatpush1.msra.mxu0 0.0
        %1185 = vmatprep.subr.mxu0 0.0
        %1186 = vmatpush1.msra.mxu0 %v1036
        %1187 = vmatprep.subr.mxu0 0.0
        %1188 = vmatpush1.msra.mxu0 %v1035
        %1189 = vmatprep.subr.mxu0 0.0
        %1190 = vmatpush1.msra.mxu0 %v1034
        %1191 = vmatprep.subr.mxu0 0.0
        %1192 = vmatpush1.msra.mxu0 %v1033
        %1193 = vmatprep.subr.mxu0 0.0
        %1194 = vmatpush1.msra.mxu0 %v1032
        %1195 = vmatprep.subr.mxu0 0.0
        %1196 = vmatpush1.msra.mxu0 %v1031
        %1197 = vmatprep.subr.mxu0 0.0
        %1198 = vmatpush1.msra.mxu0 %v1030
        %1199 = vmatprep.subr.mxu0 0.0
        %1200 = vmatpush1.msra.mxu0 %v1029
        %1201 = vmatprep.subr.mxu0 0.0
        %1202 = vmatpush1.msra.mxu0 %v1028
        %1203 = vmatprep.subr.mxu0 0.0
        %1204 = vmatpush2.msra.mxu0 0.0
        %1205 = vmatprep.subr.mxu0 0.0
        %1206 = vmatpush2.msra.mxu0 0.0
        %1207 = vmatprep.subr.mxu0 0.0
        %1208 = vmatpush2.msra.mxu0 0.0
        %1209 = vmatprep.subr.mxu0 0.0
        %1210 = vmatpush2.msra.mxu0 0.0
        %1211 = vmatprep.subr.mxu0 0.0
        %1212 = vmatpush2.msra.mxu0 0.0
        %1213 = vmatprep.subr.mxu0 0.0
        %1214 = vmatpush2.msra.mxu0 0.0
        %1215 = vmatprep.subr.mxu0 0.0
        %1216 = vmatpush2.msra.mxu0 0.0
        %1217 = vmatprep.subr.mxu0 0.0
        %1218 = vmatpush2.msra.mxu0 0.0
        %1219 = vmatprep.subr.mxu0 0.0
        %1220 = vmatpush2.msra.mxu0 0.0
        %1221 = vmatprep.subr.mxu0 0.0
        %1222 = vmatpush2.msra.mxu0 0.0
        %1223 = vmatprep.subr.mxu0 0.0
        %1224 = vmatpush2.msra.mxu0 0.0
        %1225 = vmatprep.subr.mxu0 0.0
        %1226 = vmatpush2.msra.mxu0 0.0
        %1227 = vmatprep.subr.mxu0 0.0
        %1228 = vmatpush2.msra.mxu0 0.0
        %1229 = vmatprep.subr.mxu0 0.0
        %1230 = vmatpush2.msra.mxu0 0.0
        %1231 = vmatprep.subr.mxu0 0.0
        %1232 = vmatpush2.msra.mxu0 0.0
        %1233 = vmatprep.subr.mxu0 0.0
        %1234 = vmatpush2.msra.mxu0 0.0
        %1235 = vmatprep.mubr.f32.mxu0 0.0
        %1236 = vmatmul.mubr.f32.gmra.mxu0 %v1099
        %v1237 = vpop.f32.mrf.mxu0
        %v1238 = vadd.f32 %v1095, %v1237
        %v1239 = vpop.f32.mrf.mxu0
        %1240 = vdwg.mxu0
        %1241 = vmatprep.subr.mxu0 0.0
        %1242 = vmatpush1.msra.mxu0 0.0
        %1243 = vmatprep.subr.mxu0 0.0
        %1244 = vmatpush1.msra.mxu0 0.0
        %1245 = vmatprep.subr.mxu0 0.0
        %1246 = vmatpush1.msra.mxu0 0.0
        %1247 = vmatprep.subr.mxu0 0.0
        %1248 = vmatpush1.msra.mxu0 0.0
        %1249 = vmatprep.subr.mxu0 0.0
        %1250 = vmatpush1.msra.mxu0 0.0
        %1251 = vmatprep.subr.mxu0 0.0
        %1252 = vmatpush1.msra.mxu0 0.0
        %1253 = vmatprep.subr.mxu0 0.0
        %1254 = vmatpush1.msra.mxu0 0.0
        %1255 = vmatprep.subr.mxu0 0.0
        %1256 = vmatpush1.msra.mxu0 %v1045
        %1257 = vmatprep.subr.mxu0 0.0
        %1258 = vmatpush1.msra.mxu0 %v1044
        %1259 = vmatprep.subr.mxu0 0.0
        %1260 = vmatpush1.msra.mxu0 %v1043
        %1261 = vmatprep.subr.mxu0 0.0
        %1262 = vmatpush1.msra.mxu0 %v1042
        %1263 = vmatprep.subr.mxu0 0.0
        %1264 = vmatpush1.msra.mxu0 %v1041
        %1265 = vmatprep.subr.mxu0 0.0
        %1266 = vmatpush1.msra.mxu0 %v1040
        %1267 = vmatprep.subr.mxu0 0.0
        %1268 = vmatpush1.msra.mxu0 %v1039
        %1269 = vmatprep.subr.mxu0 0.0
        %1270 = vmatpush1.msra.mxu0 %v1038
        %1271 = vmatprep.subr.mxu0 0.0
        %1272 = vmatpush1.msra.mxu0 %v1037
        %1273 = vmatprep.subr.mxu0 0.0
        %1274 = vmatpush2.msra.mxu0 0.0
        %1275 = vmatprep.subr.mxu0 0.0
        %1276 = vmatpush2.msra.mxu0 0.0
        %1277 = vmatprep.subr.mxu0 0.0
        %1278 = vmatpush2.msra.mxu0 0.0
        %1279 = vmatprep.subr.mxu0 0.0
        %1280 = vmatpush2.msra.mxu0 0.0
        %1281 = vmatprep.subr.mxu0 0.0
        %1282 = vmatpush2.msra.mxu0 0.0
        %1283 = vmatprep.subr.mxu0 0.0
        %1284 = vmatpush2.msra.mxu0 0.0
        %1285 = vmatprep.subr.mxu0 0.0
        %1286 = vmatpush2.msra.mxu0 0.0
        %1287 = vmatprep.subr.mxu0 0.0
        %1288 = vmatpush2.msra.mxu0 0.0
        %1289 = vmatprep.subr.mxu0 0.0
        %1290 = vmatpush2.msra.mxu0 0.0
        %1291 = vmatprep.subr.mxu0 0.0
        %1292 = vmatpush2.msra.mxu0 0.0
        %1293 = vmatprep.subr.mxu0 0.0
        %1294 = vmatpush2.msra.mxu0 0.0
        %1295 = vmatprep.subr.mxu0 0.0
        %1296 = vmatpush2.msra.mxu0 0.0
        %1297 = vmatprep.subr.mxu0 0.0
        %1298 = vmatpush2.msra.mxu0 0.0
        %1299 = vmatprep.subr.mxu0 0.0
        %1300 = vmatpush2.msra.mxu0 0.0
        %1301 = vmatprep.subr.mxu0 0.0
        %1302 = vmatpush2.msra.mxu0 0.0
        %1303 = vmatprep.subr.mxu0 0.0
        %1304 = vmatpush2.msra.mxu0 0.0
        %1305 = vmatprep.mubr.f32.mxu0 0.0
        %1306 = vmatmul.mubr.f32.gmra.mxu0 %v1099
        %v1307 = vpop.f32.mrf.mxu0
        %v1308 = vadd.f32 %v1095, %v1307
        %v1309 = vpop.f32.mrf.mxu0
        %1310 = vdwg.mxu0
        %1311 = vmatprep.subr.mxu0 0.0
        %1312 = vmatpush1.msra.mxu0 0.0
        %1313 = vmatprep.subr.mxu0 0.0
        %1314 = vmatpush1.msra.mxu0 0.0
        %1315 = vmatprep.subr.mxu0 0.0
        %1316 = vmatpush1.msra.mxu0 0.0
        %1317 = vmatprep.subr.mxu0 0.0
        %1318 = vmatpush1.msra.mxu0 0.0
        %1319 = vmatprep.subr.mxu0 0.0
        %1320 = vmatpush1.msra.mxu0 0.0
        %1321 = vmatprep.subr.mxu0 0.0
        %1322 = vmatpush1.msra.mxu0 0.0
        %1323 = vmatprep.subr.mxu0 0.0
        %1324 = vmatpush1.msra.mxu0 0.0
        %1325 = vmatprep.subr.mxu0 0.0
        %1326 = vmatpush1.msra.mxu0 %v1054
        %1327 = vmatprep.subr.mxu0 0.0
        %1328 = vmatpush1.msra.mxu0 %v1053
        %1329 = vmatprep.subr.mxu0 0.0
        %1330 = vmatpush1.msra.mxu0 %v1052
        %1331 = vmatprep.subr.mxu0 0.0
        %1332 = vmatpush1.msra.mxu0 %v1051
        %1333 = vmatprep.subr.mxu0 0.0
        %1334 = vmatpush1.msra.mxu0 %v1050
        %1335 = vmatprep.subr.mxu0 0.0
        %1336 = vmatpush1.msra.mxu0 %v1049
        %1337 = vmatprep.subr.mxu0 0.0
        %1338 = vmatpush1.msra.mxu0 %v1048
        %1339 = vmatprep.subr.mxu0 0.0
        %1340 = vmatpush1.msra.mxu0 %v1047
        %1341 = vmatprep.subr.mxu0 0.0
        %1342 = vmatpush1.msra.mxu0 %v1046
        %1343 = vmatprep.subr.mxu0 0.0
        %1344 = vmatpush2.msra.mxu0 0.0
        %1345 = vmatprep.subr.mxu0 0.0
        %1346 = vmatpush2.msra.mxu0 0.0
        %1347 = vmatprep.subr.mxu0 0.0
        %1348 = vmatpush2.msra.mxu0 0.0
        %1349 = vmatprep.subr.mxu0 0.0
        %1350 = vmatpush2.msra.mxu0 0.0
        %1351 = vmatprep.subr.mxu0 0.0
        %1352 = vmatpush2.msra.mxu0 0.0
        %1353 = vmatprep.subr.mxu0 0.0
        %1354 = vmatpush2.msra.mxu0 0.0
        %1355 = vmatprep.subr.mxu0 0.0
        %1356 = vmatpush2.msra.mxu0 0.0
        %1357 = vmatprep.subr.mxu0 0.0
        %1358 = vmatpush2.msra.mxu0 0.0
        %1359 = vmatprep.subr.mxu0 0.0
        %1360 = vmatpush2.msra.mxu0 0.0
        %1361 = vmatprep.subr.mxu0 0.0
        %1362 = vmatpush2.msra.mxu0 0.0
        %1363 = vmatprep.subr.mxu0 0.0
        %1364 = vmatpush2.msra.mxu0 0.0
        %1365 = vmatprep.subr.mxu0 0.0
        %1366 = vmatpush2.msra.mxu0 0.0
        %1367 = vmatprep.subr.mxu0 0.0
        %1368 = vmatpush2.msra.mxu0 0.0
        %1369 = vmatprep.subr.mxu0 0.0
        %1370 = vmatpush2.msra.mxu0 0.0
        %1371 = vmatprep.subr.mxu0 0.0
        %1372 = vmatpush2.msra.mxu0 0.0
        %1373 = vmatprep.subr.mxu0 0.0
        %1374 = vmatpush2.msra.mxu0 0.0
        %1375 = vmatprep.mubr.f32.mxu0 0.0
        %1376 = vmatmul.mubr.f32.gmra.mxu0 %v1099
        %v1377 = vpop.f32.mrf.mxu0
        %v1378 = vadd.f32 %v1095, %v1377
        %v1379 = vpop.f32.mrf.mxu0
        %1380 = vdwg.mxu0
        %1381 = vmatprep.subr.mxu0 0.0
        %1382 = vmatpush1.msra.mxu0 0.0
        %1383 = vmatprep.subr.mxu0 0.0
        %1384 = vmatpush1.msra.mxu0 0.0
        %1385 = vmatprep.subr.mxu0 0.0
        %1386 = vmatpush1.msra.mxu0 0.0
        %1387 = vmatprep.subr.mxu0 0.0
        %1388 = vmatpush1.msra.mxu0 0.0
        %1389 = vmatprep.subr.mxu0 0.0
        %1390 = vmatpush1.msra.mxu0 0.0
        %1391 = vmatprep.subr.mxu0 0.0
        %1392 = vmatpush1.msra.mxu0 0.0
        %1393 = vmatprep.subr.mxu0 0.0
        %1394 = vmatpush1.msra.mxu0 0.0
        %1395 = vmatprep.subr.mxu0 0.0
        %1396 = vmatpush1.msra.mxu0 %v1063
        %1397 = vmatprep.subr.mxu0 0.0
        %1398 = vmatpush1.msra.mxu0 %v1062
        %1399 = vmatprep.subr.mxu0 0.0
        %1400 = vmatpush1.msra.mxu0 %v1061
        %1401 = vmatprep.subr.mxu0 0.0
        %1402 = vmatpush1.msra.mxu0 %v1060
        %1403 = vmatprep.subr.mxu0 0.0
        %1404 = vmatpush1.msra.mxu0 %v1059
        %1405 = vmatprep.subr.mxu0 0.0
        %1406 = vmatpush1.msra.mxu0 %v1058
        %1407 = vmatprep.subr.mxu0 0.0
        %1408 = vmatpush1.msra.mxu0 %v1057
        %1409 = vmatprep.subr.mxu0 0.0
        %1410 = vmatpush1.msra.mxu0 %v1056
        %1411 = vmatprep.subr.mxu0 0.0
        %1412 = vmatpush1.msra.mxu0 %v1055
        %1413 = vmatprep.subr.mxu0 0.0
        %1414 = vmatpush2.msra.mxu0 0.0
        %1415 = vmatprep.subr.mxu0 0.0
        %1416 = vmatpush2.msra.mxu0 0.0
        %1417 = vmatprep.subr.mxu0 0.0
        %1418 = vmatpush2.msra.mxu0 0.0
        %1419 = vmatprep.subr.mxu0 0.0
        %1420 = vmatpush2.msra.mxu0 0.0
        %1421 = vmatprep.subr.mxu0 0.0
        %1422 = vmatpush2.msra.mxu0 0.0
        %1423 = vmatprep.subr.mxu0 0.0
        %1424 = vmatpush2.msra.mxu0 0.0
        %1425 = vmatprep.subr.mxu0 0.0
        %1426 = vmatpush2.msra.mxu0 0.0
        %1427 = vmatprep.subr.mxu0 0.0
        %1428 = vmatpush2.msra.mxu0 0.0
        %1429 = vmatprep.subr.mxu0 0.0
        %1430 = vmatpush2.msra.mxu0 0.0
        %1431 = vmatprep.subr.mxu0 0.0
        %1432 = vmatpush2.msra.mxu0 0.0
        %1433 = vmatprep.subr.mxu0 0.0
        %1434 = vmatpush2.msra.mxu0 0.0
        %1435 = vmatprep.subr.mxu0 0.0
        %1436 = vmatpush2.msra.mxu0 0.0
        %1437 = vmatprep.subr.mxu0 0.0
        %1438 = vmatpush2.msra.mxu0 0.0
        %1439 = vmatprep.subr.mxu0 0.0
        %1440 = vmatpush2.msra.mxu0 0.0
        %1441 = vmatprep.subr.mxu0 0.0
        %1442 = vmatpush2.msra.mxu0 0.0
        %1443 = vmatprep.subr.mxu0 0.0
        %1444 = vmatpush2.msra.mxu0 0.0
        %1445 = vmatprep.mubr.f32.mxu0 0.0
        %1446 = vmatmul.mubr.f32.gmra.mxu0 %v1099
        %v1447 = vpop.f32.mrf.mxu0
        %v1448 = vadd.f32 %v1095, %v1447
        %v1449 = vpop.f32.mrf.mxu0
        %1450 = vdwg.mxu0
        %1451 = vmatprep.subr.mxu0 0.0
        %1452 = vmatpush1.msra.mxu0 0.0
        %1453 = vmatprep.subr.mxu0 0.0
        %1454 = vmatpush1.msra.mxu0 0.0
        %1455 = vmatprep.subr.mxu0 0.0
        %1456 = vmatpush1.msra.mxu0 0.0
        %1457 = vmatprep.subr.mxu0 0.0
        %1458 = vmatpush1.msra.mxu0 0.0
        %1459 = vmatprep.subr.mxu0 0.0
        %1460 = vmatpush1.msra.mxu0 0.0
        %1461 = vmatprep.subr.mxu0 0.0
        %1462 = vmatpush1.msra.mxu0 0.0
        %1463 = vmatprep.subr.mxu0 0.0
        %1464 = vmatpush1.msra.mxu0 0.0
        %1465 = vmatprep.subr.mxu0 0.0
        %1466 = vmatpush1.msra.mxu0 %v1072
        %1467 = vmatprep.subr.mxu0 0.0
        %1468 = vmatpush1.msra.mxu0 %v1071
        %1469 = vmatprep.subr.mxu0 0.0
        %1470 = vmatpush1.msra.mxu0 %v1070
        %1471 = vmatprep.subr.mxu0 0.0
        %1472 = vmatpush1.msra.mxu0 %v1069
        %1473 = vmatprep.subr.mxu0 0.0
        %1474 = vmatpush1.msra.mxu0 %v1068
        %1475 = vmatprep.subr.mxu0 0.0
        %1476 = vmatpush1.msra.mxu0 %v1067
        %1477 = vmatprep.subr.mxu0 0.0
        %1478 = vmatpush1.msra.mxu0 %v1066
        %1479 = vmatprep.subr.mxu0 0.0
        %1480 = vmatpush1.msra.mxu0 %v1065
        %1481 = vmatprep.subr.mxu0 0.0
        %1482 = vmatpush1.msra.mxu0 %v1064
        %1483 = vmatprep.subr.mxu0 0.0
        %1484 = vmatpush2.msra.mxu0 0.0
        %1485 = vmatprep.subr.mxu0 0.0
        %1486 = vmatpush2.msra.mxu0 0.0
        %1487 = vmatprep.subr.mxu0 0.0
        %1488 = vmatpush2.msra.mxu0 0.0
        %1489 = vmatprep.subr.mxu0 0.0
        %1490 = vmatpush2.msra.mxu0 0.0
        %1491 = vmatprep.subr.mxu0 0.0
        %1492 = vmatpush2.msra.mxu0 0.0
        %1493 = vmatprep.subr.mxu0 0.0
        %1494 = vmatpush2.msra.mxu0 0.0
        %1495 = vmatprep.subr.mxu0 0.0
        %1496 = vmatpush2.msra.mxu0 0.0
        %1497 = vmatprep.subr.mxu0 0.0
        %1498 = vmatpush2.msra.mxu0 0.0
        %1499 = vmatprep.subr.mxu0 0.0
        %1500 = vmatpush2.msra.mxu0 0.0
        %1501 = vmatprep.subr.mxu0 0.0
        %1502 = vmatpush2.msra.mxu0 0.0
        %1503 = vmatprep.subr.mxu0 0.0
        %1504 = vmatpush2.msra.mxu0 0.0
        %1505 = vmatprep.subr.mxu0 0.0
        %1506 = vmatpush2.msra.mxu0 0.0
        %1507 = vmatprep.subr.mxu0 0.0
        %1508 = vmatpush2.msra.mxu0 0.0
        %1509 = vmatprep.subr.mxu0 0.0
        %1510 = vmatpush2.msra.mxu0 0.0
        %1511 = vmatprep.subr.mxu0 0.0
        %1512 = vmatpush2.msra.mxu0 0.0
        %1513 = vmatprep.subr.mxu0 0.0
        %1514 = vmatpush2.msra.mxu0 0.0
        %1515 = vmatprep.mubr.f32.mxu0 0.0
        %1516 = vmatmul.mubr.f32.gmra.mxu0 %v1099
        %v1517 = vpop.f32.mrf.mxu0
        %v1518 = vadd.f32 %v1095, %v1517
        %v1519 = vpop.f32.mrf.mxu0
        %1520 = vdwg.mxu0
        %1521 = vmatprep.subr.mxu0 0.0
        %1522 = vmatpush1.msra.mxu0 0.0
        %1523 = vmatprep.subr.mxu0 0.0
        %1524 = vmatpush1.msra.mxu0 0.0
        %1525 = vmatprep.subr.mxu0 0.0
        %1526 = vmatpush1.msra.mxu0 0.0
        %1527 = vmatprep.subr.mxu0 0.0
        %1528 = vmatpush1.msra.mxu0 0.0
        %1529 = vmatprep.subr.mxu0 0.0
        %1530 = vmatpush1.msra.mxu0 0.0
        %1531 = vmatprep.subr.mxu0 0.0
        %1532 = vmatpush1.msra.mxu0 0.0
        %1533 = vmatprep.subr.mxu0 0.0
        %1534 = vmatpush1.msra.mxu0 0.0
        %1535 = vmatprep.subr.mxu0 0.0
        %1536 = vmatpush1.msra.mxu0 %v1081
        %1537 = vmatprep.subr.mxu0 0.0
        %1538 = vmatpush1.msra.mxu0 %v1080
        %1539 = vmatprep.subr.mxu0 0.0
        %1540 = vmatpush1.msra.mxu0 %v1079
        %1541 = vmatprep.subr.mxu0 0.0
        %1542 = vmatpush1.msra.mxu0 %v1078
        %1543 = vmatprep.subr.mxu0 0.0
        %1544 = vmatpush1.msra.mxu0 %v1077
        %1545 = vmatprep.subr.mxu0 0.0
        %1546 = vmatpush1.msra.mxu0 %v1076
        %1547 = vmatprep.subr.mxu0 0.0
        %1548 = vmatpush1.msra.mxu0 %v1075
        %1549 = vmatprep.subr.mxu0 0.0
        %1550 = vmatpush1.msra.mxu0 %v1074
        %1551 = vmatprep.subr.mxu0 0.0
        %1552 = vmatpush1.msra.mxu0 %v1073
        %1553 = vmatprep.subr.mxu0 0.0
        %1554 = vmatpush2.msra.mxu0 0.0
        %1555 = vmatprep.subr.mxu0 0.0
        %1556 = vmatpush2.msra.mxu0 0.0
        %1557 = vmatprep.subr.mxu0 0.0
        %1558 = vmatpush2.msra.mxu0 0.0
        %1559 = vmatprep.subr.mxu0 0.0
        %1560 = vmatpush2.msra.mxu0 0.0
        %1561 = vmatprep.subr.mxu0 0.0
        %1562 = vmatpush2.msra.mxu0 0.0
        %1563 = vmatprep.subr.mxu0 0.0
        %1564 = vmatpush2.msra.mxu0 0.0
        %1565 = vmatprep.subr.mxu0 0.0
        %1566 = vmatpush2.msra.mxu0 0.0
        %1567 = vmatprep.subr.mxu0 0.0
        %1568 = vmatpush2.msra.mxu0 0.0
        %1569 = vmatprep.subr.mxu0 0.0
        %1570 = vmatpush2.msra.mxu0 0.0
        %1571 = vmatprep.subr.mxu0 0.0
        %1572 = vmatpush2.msra.mxu0 0.0
        %1573 = vmatprep.subr.mxu0 0.0
        %1574 = vmatpush2.msra.mxu0 0.0
        %1575 = vmatprep.subr.mxu0 0.0
        %1576 = vmatpush2.msra.mxu0 0.0
        %1577 = vmatprep.subr.mxu0 0.0
        %1578 = vmatpush2.msra.mxu0 0.0
        %1579 = vmatprep.subr.mxu0 0.0
        %1580 = vmatpush2.msra.mxu0 0.0
        %1581 = vmatprep.subr.mxu0 0.0
        %1582 = vmatpush2.msra.mxu0 0.0
        %1583 = vmatprep.subr.mxu0 0.0
        %1584 = vmatpush2.msra.mxu0 0.0
        %1585 = vmatprep.mubr.f32.mxu0 0.0
        %1586 = vmatmul.mubr.f32.gmra.mxu0 %v1099
        %v1587 = vpop.f32.mrf.mxu0
        %v1588 = vadd.f32 %v1095, %v1587
        %v1589 = vpop.f32.mrf.mxu0
        %1590 = vdwg.mxu0
        %1591 = vmatprep.subr.mxu0 0.0
        %1592 = vmatpush1.msra.mxu0 0.0
        %1593 = vmatprep.subr.mxu0 0.0
        %1594 = vmatpush1.msra.mxu0 0.0
        %1595 = vmatprep.subr.mxu0 0.0
        %1596 = vmatpush1.msra.mxu0 0.0
        %1597 = vmatprep.subr.mxu0 0.0
        %1598 = vmatpush1.msra.mxu0 0.0
        %1599 = vmatprep.subr.mxu0 0.0
        %1600 = vmatpush1.msra.mxu0 0.0
        %1601 = vmatprep.subr.mxu0 0.0
        %1602 = vmatpush1.msra.mxu0 0.0
        %1603 = vmatprep.subr.mxu0 0.0
        %1604 = vmatpush1.msra.mxu0 0.0
        %1605 = vmatprep.subr.mxu0 0.0
        %1606 = vmatpush1.msra.mxu0 %v1090
        %1607 = vmatprep.subr.mxu0 0.0
        %1608 = vmatpush1.msra.mxu0 %v1089
        %1609 = vmatprep.subr.mxu0 0.0
        %1610 = vmatpush1.msra.mxu0 %v1088
        %1611 = vmatprep.subr.mxu0 0.0
        %1612 = vmatpush1.msra.mxu0 %v1087
        %1613 = vmatprep.subr.mxu0 0.0
        %1614 = vmatpush1.msra.mxu0 %v1086
        %1615 = vmatprep.subr.mxu0 0.0
        %1616 = vmatpush1.msra.mxu0 %v1085
        %1617 = vmatprep.subr.mxu0 0.0
        %1618 = vmatpush1.msra.mxu0 %v1084
        %1619 = vmatprep.subr.mxu0 0.0
        %1620 = vmatpush1.msra.mxu0 %v1083
        %1621 = vmatprep.subr.mxu0 0.0
        %1622 = vmatpush1.msra.mxu0 %v1082
        %1623 = vmatprep.subr.mxu0 0.0
        %1624 = vmatpush2.msra.mxu0 0.0
        %1625 = vmatprep.subr.mxu0 0.0
        %1626 = vmatpush2.msra.mxu0 0.0
        %1627 = vmatprep.subr.mxu0 0.0
        %1628 = vmatpush2.msra.mxu0 0.0
        %1629 = vmatprep.subr.mxu0 0.0
        %1630 = vmatpush2.msra.mxu0 0.0
        %1631 = vmatprep.subr.mxu0 0.0
        %1632 = vmatpush2.msra.mxu0 0.0
        %1633 = vmatprep.subr.mxu0 0.0
        %1634 = vmatpush2.msra.mxu0 0.0
        %1635 = vmatprep.subr.mxu0 0.0
        %1636 = vmatpush2.msra.mxu0 0.0
        %1637 = vmatprep.subr.mxu0 0.0
        %1638 = vmatpush2.msra.mxu0 0.0
        %1639 = vmatprep.subr.mxu0 0.0
        %1640 = vmatpush2.msra.mxu0 0.0
        %1641 = vmatprep.subr.mxu0 0.0
        %1642 = vmatpush2.msra.mxu0 0.0
        %1643 = vmatprep.subr.mxu0 0.0
        %1644 = vmatpush2.msra.mxu0 0.0
        %1645 = vmatprep.subr.mxu0 0.0
        %1646 = vmatpush2.msra.mxu0 0.0
        %1647 = vmatprep.subr.mxu0 0.0
        %1648 = vmatpush2.msra.mxu0 0.0
        %1649 = vmatprep.subr.mxu0 0.0
        %1650 = vmatpush2.msra.mxu0 0.0
        %1651 = vmatprep.subr.mxu0 0.0
        %1652 = vmatpush2.msra.mxu0 0.0
        %1653 = vmatprep.subr.mxu0 0.0
        %1654 = vmatpush2.msra.mxu0 0.0
        %1655 = vmatprep.mubr.f32.mxu0 0.0
        %1656 = vmatmul.mubr.f32.gmra.mxu0 %v1099
        %v1657 = vpop.f32.mrf.mxu0
        %v1658 = vadd.f32 %v1095, %v1657
        %v1659 = vpop.f32.mrf.mxu0
        %1660 = vdwg.mxu0
        %1662 = vrot.lane.b32.xlu0 %v1238, 32
        %v1663 = vpop.permute.xlu0 %1662
        %1666 = vrot.lane.b32.xlu0 %v1308, 64
        %v1667 = vpop.permute.xlu0 %1666
        %1670 = vrot.lane.b32.xlu0 %v1378, 96
        %v1671 = vpop.permute.xlu0 %1670
        %1674 = vrot.lane.b32.xlu0 %v1518, 32
        %v1675 = vpop.permute.xlu0 %1674
        %1678 = vrot.lane.b32.xlu0 %v1588, 64
        %v1679 = vpop.permute.xlu0 %1678
        %1682 = vrot.lane.b32.xlu0 %v1658, 96
        %v1683 = vpop.permute.xlu0 %1682
        %v1685 = vsel %vm689, %v1168, %v1663
        %vm1686 = vcmask 523264
        %v1687 = vsel %vm1686, %v1685, %v1667
        %vm1688 = vcmask 785408
        %v1689 = vsel %vm1688, %v1687, %v1671
        %v1690 = vsel %vm689, %v1448, %v1675
        %v1691 = vsel %vm1686, %v1690, %v1679
        %v1692 = vsel %vm1688, %v1691, %v1683
        %v1695 = vcombine.low %v1689, %v1692
        %1697 = vst [vmem:[%s204] sm:$0xff] %v1695
        %s1698 = sand.u32 %s129, 1
        %s1699 = scalar_lea.sflag [#allocation5], %s1698
        %s1700 = sand.u32 %s129, 1
        %s1701 = smul.addr %s1700, 8
        %s1702 = scalar_lea.vmem [#allocation4], %s1701
        // Predicated region
        $region37: #{tpu_custom_call.1} parent=35 // pred_check
          %p1703 = pneg %p139
        $region38: #{tpu_custom_call.1} parent=35 // pred_check_branch
          %1705 = sbr.rel (%p1703) target = $region40
        $region39: #{tpu_custom_call.1} parent=35 // pred_region
          %s1706 = smul.u32 2, %s23
          %s1708 = ssub.s32 128, 128
          %1709 = vsyncadd %s1699, %s1708
          %s1710 = smul.addr %s22, 8
          %s1711 = sadd.s32 %s1706, %s1710
          %s1712 = smul.addr %s1711, 64
          %s1713 = scalar_lea.hbm %s4, %s1712
          %s1715 = sshll.u32 %s1702, 4
          %s1716 = int_to_ptr.vmem [resolvable:$true] %s1715
          %1718 = dma.vmem_to_hbm [thread:$0]  %s1716, 128, %s1713, %s1699
        $region40: #{tpu_custom_call.1} parent=35 // pred_fallthru
          _
      $region36: #{tpu_custom_call.1} parent=5 // pred_fallthru
        _
      %p1719 = scmp.le.s32.totalorder 2, %s13
      // Predicated region
      $region41: #{tpu_custom_call.1} parent=5 // pred_check
        %p1720 = pneg %p1719
      $region42: #{tpu_custom_call.1} parent=5 // pred_check_branch
        %1722 = sbr.rel (%p1720) target = $region44
      $region43: #{tpu_custom_call.1} parent=5 // pred_region
        %s1723 = ssub.s32 %s13, 2
        // Predicated region
        $region45: #{tpu_custom_call.1} parent=43 // pred_check
          %p1724 = pneg %p145
        $region46: #{tpu_custom_call.1} parent=43 // pred_check_branch
          %1726 = sbr.rel (%p1724) target = $region48
        $region47: #{tpu_custom_call.1} parent=43 // pred_region
          %s1727 = sand.u32 %s130, 1
          %s1728 = scalar_lea.sflag [#allocation5], %s1727
          %s1729 = sand.u32 %s130, 1
          %s1730 = smul.addr %s1729, 8
          %s1731 = scalar_lea.vmem [#allocation4], %s1730
          %1732 = dma.done %s1728, 128
        $region48: #{tpu_custom_call.1} parent=43 // pred_fallthru
          _
      $region44: #{tpu_custom_call.1} parent=5 // pred_fallthru
        _
    $region6: #{tpu_custom_call.1} parent=1 // loop_footer
      %s17 = sadd.s32 1, %s13
    $region7: #{tpu_custom_call.1} parent=1 // loop_footer_branch
      %12 = sbr.rel target = $region3
    $region8: #{tpu_custom_call.1} parent=1 // loop_exit
      _
    %1733 = vsyncpa [#allocation5], 1
    %s1734 = scalar_lea.sflag [#allocation5], 1
    %1735 = vsyncpa %s1734, 1

</llo_original>
